<compile_context>
chip_gen: v6e
topology: v6e:2x2x1
jax: 0.10.0
libtpu: 0.0.40
codegen_flags: <defaults>
</compile_context>

<pallas_src>
import jax
import jax.numpy as jnp
from jax.experimental import pallas as pl
from jax.experimental.pallas import tpu as pltpu


def _round_up(a, m):
    return (a + m - 1) // m * m


def _make_kernel(*, L, C, H, K, TILE_N, L2, L3, L2S, L3S, compute_dtype):
    """Build the per-tile kernel with all shape constants baked in."""
    f32 = jnp.float32
    cdt = compute_dtype

    def kernel(x_ref, w1_ref, b1_ref, w2_ref, b2_ref, w3_ref, b3_ref,
               wf_ref, bf_ref, o_ref, pad2_ref, pad3_ref):
        # ---- conv1 (kernel_size=1): plain channel-mix matmul, no pad buffer.
        x2d = x_ref[...].astype(f32).reshape(TILE_N * L, C)
        y1 = jnp.maximum(
            jnp.dot(x2d, w1_ref[...], preferred_element_type=f32) + b1_ref[...],
            0.0).reshape(TILE_N, L, H)

        # conv1's two padded positions see only the bias -> constant relu(b1).
        rb1 = jnp.broadcast_to(jnp.maximum(b1_ref[...], 0.0)[None, :, :],
                               (TILE_N, 1, H))
        zrow = jnp.zeros((TILE_N, 1, H), f32)
        zero_rb1 = jnp.concatenate([zrow, rb1], axis=1).astype(cdt)  # [0, relu(b1)]
        rb1_zero = jnp.concatenate([rb1, zrow], axis=1).astype(cdt)  # [relu(b1), 0]
        zeros2 = jnp.zeros((TILE_N, 2, H), cdt)

        # ---- conv2 padded input -> persistent VMEM scratch.
        # Meaningful rows 0..L+3: [0]=0, [1]=relu(b1), [2..L+1]=y1,
        # [L+2]=relu(b1), [L+3]=0.  Valid outputs (j < L2) only ever read these
        # rows; uninitialised tail rows only feed junk output rows (j >= L2)
        # that are sliced off below.  All stores land at even sublane offsets /
        # lengths so the bf16 path stays pair-packing aligned.
        pad2_ref[:, 0:2, :] = zero_rb1
        pad2_ref[:, 2:2 + L, :] = y1.astype(cdt)
        pad2_ref[:, L + 2:L + 4, :] = rb1_zero

        def conv_relu(pad_ref, w_ref, b_ref, ls, shift):
            # One aligned full-slab load; K accumulated MXU matmuls over
            # shifted views (no im2col buffer).  f32 accumulation throughout.
            a = pad_ref[...].astype(f32)
            acc = jnp.zeros((TILE_N * ls, H), f32)
            for k in range(K):
                lhs = a[:, shift + k:shift + k + ls, :].reshape(TILE_N * ls, H)
                acc = acc + jnp.dot(lhs, w_ref[k], preferred_element_type=f32)
            return jnp.maximum(acc + b_ref[...], 0.0).reshape(TILE_N, ls, H)

        y2 = conv_relu(pad2_ref, w2_ref, b2_ref, L2S, 0)    # rows >= L2 are junk

        # ---- conv3 padded input -> scratch.  One dead leading row keeps every
        # store even-aligned.  Meaningful rows 1..L2+2: [1]=0, [2..L2+1]=y2,
        # [L2+2]=0; taps therefore read with shift=1.
        pad3_ref[:, 0:2, :] = zeros2
        pad3_ref[:, 2:2 + L2, :] = y2[:, :L2, :].astype(cdt)
        pad3_ref[:, L2 + 2:L2 + 4, :] = zeros2

        y3 = conv_relu(pad3_ref, w3_ref, b3_ref, L3S, 1)    # rows >= L3 are junk

        # ---- sum over valid length, then fc1 as a VPU/XLU lane reduce
        # (no 1-lane MXU dot); lane-major (1, 1, TILE_N) output slab.
        pooled = jnp.sum(y3[:, :L3, :], axis=1)                      # (TILE_N, H)
        out = jnp.sum(pooled * wf_ref[...], axis=1) + bf_ref[0]      # (TILE_N,)
        o_ref[...] = out[None, None, :]

    return kernel


def cnn_embeddings_predictor(embs, inds, params, *, tile_n=512, use_bf16=False):
    """Pallas forward. `inds` is unused (base-class _detokenize is identity)."""
    del inds
    w1, b1, w2, b2, w3, b3, wf, bf = params            # torch-shaped params
    N, L, C = embs.shape
    H, _, K = w2.shape

    # PyTorch conv output lengths, 8-aligned stored lengths, scratch row counts.
    L2 = L + 5 - K
    L3 = L + 8 - 2 * K
    L2S = _round_up(L2, 8)
    L3S = _round_up(L3, 8)
    P2 = max(L2S + K - 1, L + 4)       # conv2 padded-input scratch rows
    P3 = max(L3S + K, L2 + 4)          # conv3 padded-input scratch rows (+1 dead)

    # Batch tiling: big tiles (amortise the ~0.35us/step grid overhead), but
    # always >= 2 grid steps once N >= 16 so ("parallel",) can use both v7x TCs.
    tile_cap = max(128, _round_up(tile_n, 128))
    G = pl.cdiv(N, tile_cap)
    if N >= 16:
        G = max(G, 2)
    G = max(G, 1)
    TILE_N = max(8, _round_up(pl.cdiv(N, G), 8))
    N_pad = G * TILE_N

    cdt = jnp.bfloat16 if use_bf16 else jnp.float32
    x = embs.astype(cdt)                               # cast BEFORE any copies
    if N_pad != N:
        x = jnp.pad(x, ((0, N_pad - N), (0, 0), (0, 0)))

    # Kernel-friendly weight layouts (channels-last / per-tap matrices), f32.
    w1_k = jnp.transpose(w1[:, :, 0]).astype(jnp.float32)        # (C, H)
    w2_k = jnp.transpose(w2, (2, 1, 0)).astype(jnp.float32)      # (K, H, H) [k,in,out]
    w3_k = jnp.transpose(w3, (2, 1, 0)).astype(jnp.float32)      # (K, H, H)
    b1_k = b1.reshape(1, H).astype(jnp.float32)
    b2_k = b2.reshape(1, H).astype(jnp.float32)
    b3_k = b3.reshape(1, H).astype(jnp.float32)
    wf_k = wf.reshape(1, H).astype(jnp.float32)
    bf_k = bf.reshape(1).astype(jnp.float32)

    kernel = _make_kernel(L=L, C=C, H=H, K=K, TILE_N=TILE_N,
                          L2=L2, L3=L3, L2S=L2S, L3S=L3S, compute_dtype=cdt)

    in_specs = [
        pl.BlockSpec((TILE_N, L, C), lambda i: (i, 0, 0)),   # x tile (pipelined)
        pl.BlockSpec((C, H), lambda i: (0, 0)),              # conv1 weight (resident)
        pl.BlockSpec((1, H), lambda i: (0, 0)),              # conv1 bias
        pl.BlockSpec((K, H, H), lambda i: (0, 0, 0)),        # conv2 per-tap weights
        pl.BlockSpec((1, H), lambda i: (0, 0)),              # conv2 bias
        pl.BlockSpec((K, H, H), lambda i: (0, 0, 0)),        # conv3 per-tap weights
        pl.BlockSpec((1, H), lambda i: (0, 0)),              # conv3 bias
        pl.BlockSpec((1, H), lambda i: (0, 0)),              # fc1 weight row
        pl.BlockSpec(memory_space=pltpu.MemorySpace.SMEM),   # fc1 bias scalar
    ]
    out_specs = pl.BlockSpec((1, 1, TILE_N), lambda i: (i, 0, 0))
    scratch_shapes = [
        pltpu.VMEM((TILE_N, P2, H), cdt),                    # conv2 padded input
        pltpu.VMEM((TILE_N, P3, H), cdt),                    # conv3 padded input
    ]

    # Working-set-sized VMEM request (a blanket 48 MiB was wasteful on v7x).
    itm = jnp.dtype(cdt).itemsize
    vmem_bytes = (2 * TILE_N * L * C * itm                   # x double buffer
                  + TILE_N * (P2 + P3) * H * itm             # padded scratch
                  + 8 * TILE_N * max(L2S, L3S) * H * 4)      # f32 temporaries
    vmem_bytes = int(min(96 << 20, max(16 << 20, 2 * vmem_bytes)))

    flops = (2 * N_pad * L * C * H
             + 2 * N_pad * (L2S + L3S) * K * H * H
             + N_pad * L3 * H + 2 * N_pad * H)
    inputs = (x, w1_k, b1_k, w2_k, b2_k, w3_k, b3_k, wf_k, bf_k)
    bytes_accessed = sum(int(a.size) * a.dtype.itemsize for a in inputs) + 4 * N_pad

    out = pl.pallas_call(
        kernel,
        out_shape=jax.ShapeDtypeStruct((G, 1, TILE_N), jnp.float32),
        grid=(G,),
        in_specs=in_specs,
        out_specs=out_specs,
        scratch_shapes=scratch_shapes,
        compiler_params=pltpu.CompilerParams(
            dimension_semantics=("parallel",),
            vmem_limit_bytes=vmem_bytes,
        ),
        cost_estimate=pl.CostEstimate(flops=int(flops), transcendentals=0,
                                      bytes_accessed=int(bytes_accessed)),
    )(*inputs)

    return out.reshape(N_pad)[:N]                            # (N,)


def reference_forward(embs, params):
    """Pure-JAX reference matching torch Conv1d/Linear semantics exactly."""
    w1, b1, w2, b2, w3, b3, wf, bf = params
    x = embs.swapaxes(1, 2)                                  # (N, C, L)
    dn = ('NCH', 'OIH', 'NCH')

    def conv1d(x, w, b, pad):
        y = jax.lax.conv_general_dilated(x, w, window_strides=(1,),
                                         padding=[(pad, pad)],
                                         dimension_numbers=dn)
        return y + b[None, :, None]

    x = jax.nn.relu(conv1d(x, w1, b1, 1))
    x = jax.nn.relu(conv1d(x, w2, b2, 1))
    x = jax.nn.relu(conv1d(x, w3, b3, 1))
    x = x.sum(axis=2)                                        # (N, H)
    x = x @ wf.T + bf                                        # (N, 1)
    return x[:, 0]


if __name__ == "__main__":
    # Small shapes consistent with the module.
    N, L = 2, 8                 # batch, sequence length
    C_IN, H, K = 4, 32, 3       # input_channels, hidden_channels, kernel_size

    key = jax.random.PRNGKey(0)
    keys = jax.random.split(key, 10)

    embs = jax.random.normal(keys[0], (N, L, C_IN), dtype=jnp.float32)
    inds = jnp.zeros((N, L), dtype=jnp.int32)          # unused by base class

    # Deterministic synthetic parameters (torch shapes: Conv1d (O,I,K), Linear (1,H)).
    params = (
        0.3 * jax.random.normal(keys[1], (H, C_IN, 1), jnp.float32),   # conv1.weight
        0.1 * jax.random.normal(keys[2], (H,), jnp.float32),           # conv1.bias
        0.1 * jax.random.normal(keys[3], (H, H, K), jnp.float32),      # conv2.weight
        0.1 * jax.random.normal(keys[4], (H,), jnp.float32),           # conv2.bias
        0.1 * jax.random.normal(keys[5], (H, H, K), jnp.float32),      # conv3.weight
        0.1 * jax.random.normal(keys[6], (H,), jnp.float32),           # conv3.bias
        0.1 * jax.random.normal(keys[7], (1, H), jnp.float32),         # fc1.weight
        0.1 * jax.random.normal(keys[8], (1,), jnp.float32),           # fc1.bias
    )

    ref = jax.block_until_ready(reference_forward(embs, params))

    # f32 path (default): tight tolerance.
    out = jax.block_until_ready(cnn_embeddings_predictor(embs, inds, params))
    assert out.shape == (N,), out.shape
    assert jnp.allclose(out, ref, rtol=1e-3, atol=1e-3), (out, ref)

    # bf16 activation-storage path (v6e/v7x): looser tolerance.
    out_bf = jax.block_until_ready(
        cnn_embeddings_predictor(embs, inds, params, use_bf16=True))
    assert out_bf.shape == (N,), out_bf.shape
    assert jnp.allclose(out_bf, ref, rtol=5e-2, atol=5e-2), (out_bf, ref)

    # Multi-tile path (>=2 grid steps, batch padding).
    N2 = 20
    embs2 = jax.random.normal(keys[9], (N2, L, C_IN), dtype=jnp.float32)
    inds2 = jnp.zeros((N2, L), dtype=jnp.int32)
    out2 = jax.block_until_ready(cnn_embeddings_predictor(embs2, inds2, params))
    ref2 = jax.block_until_ready(reference_forward(embs2, params))
    assert out2.shape == (N2,), out2.shape
    assert jnp.allclose(out2, ref2, rtol=1e-3, atol=1e-3), (out2, ref2)

    print("KERNEL_OK")
</pallas_src>

<mosaic_0001>
module attributes {stable_mosaic.version = 11 : i64} {
  func.func @kernel(%arg0: i32, %arg1: memref<8x8x4xf32, #tpu.memory_space<vmem>>, %arg2: memref<4x32xf32, #tpu.memory_space<vmem>>, %arg3: memref<1x32xf32, #tpu.memory_space<vmem>>, %arg4: memref<3x32x32xf32, #tpu.memory_space<vmem>>, %arg5: memref<1x32xf32, #tpu.memory_space<vmem>>, %arg6: memref<3x32x32xf32, #tpu.memory_space<vmem>>, %arg7: memref<1x32xf32, #tpu.memory_space<vmem>>, %arg8: memref<1x32xf32, #tpu.memory_space<vmem>>, %arg9: memref<1xf32, #tpu.memory_space<smem>>, %arg10: memref<1x1x8xf32, #tpu.memory_space<vmem>>, %arg11: memref<8x18x32xf32, #tpu.memory_space<vmem>>, %arg12: memref<8x19x32xf32, #tpu.memory_space<vmem>>) attributes {dimension_semantics = [#tpu.dimension_semantics<parallel>], iteration_bounds = array<i64: 1>, scalar_prefetch = 0 : i64, scratch_operands = 2 : i64, tpu.core_type = #tpu.core_type<tc>, window_params = [{transform_indices = @transform_0, window_bounds = array<i64: 8, 8, 4>}, {pipeline_mode = #tpu.pipeline_mode<synchronous>, transform_indices = @transform_1, window_bounds = array<i64: 4, 32>}, {pipeline_mode = #tpu.pipeline_mode<synchronous>, transform_indices = @transform_2, window_bounds = array<i64: 1, 32>}, {pipeline_mode = #tpu.pipeline_mode<synchronous>, transform_indices = @transform_3, window_bounds = array<i64: 3, 32, 32>}, {pipeline_mode = #tpu.pipeline_mode<synchronous>, transform_indices = @transform_4, window_bounds = array<i64: 1, 32>}, {pipeline_mode = #tpu.pipeline_mode<synchronous>, transform_indices = @transform_5, window_bounds = array<i64: 3, 32, 32>}, {pipeline_mode = #tpu.pipeline_mode<synchronous>, transform_indices = @transform_6, window_bounds = array<i64: 1, 32>}, {pipeline_mode = #tpu.pipeline_mode<synchronous>, transform_indices = @transform_7, window_bounds = array<i64: 1, 32>}, {transform_indices = @transform_8, window_bounds = array<i64: 1>}, {transform_indices = @transform_9, window_bounds = array<i64: 1, 1, 8>}]} {
    %c0 = arith.constant 0 : index
    %c0_0 = arith.constant 0 : index
    %c0_1 = arith.constant 0 : index
    %0 = vector.load %arg1[%c0, %c0_0, %c0_1] : memref<8x8x4xf32, #tpu.memory_space<vmem>>, vector<8x8x4xf32>
    %1 = vector.shape_cast %0 : vector<8x8x4xf32> to vector<64x4xf32>
    %c0_2 = arith.constant 0 : index
    %c0_3 = arith.constant 0 : index
    %2 = vector.load %arg2[%c0_2, %c0_3] : memref<4x32xf32, #tpu.memory_space<vmem>>, vector<4x32xf32>
    %cst = arith.constant dense<0.000000e+00> : vector<64x32xf32>
    %3 = tpu.matmul %1, %2, %cst {dimension_numbers = #tpu.dot_dimension_numbers<[1], [0], [0], [1], [0, 0, 1, 1], [], []>} : vector<64x4xf32>, vector<4x32xf32>, vector<64x32xf32> -> vector<64x32xf32>
    %c0_4 = arith.constant 0 : index
    %c0_5 = arith.constant 0 : index
    %4 = vector.load %arg3[%c0_4, %c0_5] : memref<1x32xf32, #tpu.memory_space<vmem>>, vector<1x32xf32>
    %5 = vector.broadcast %4 : vector<1x32xf32> to vector<64x32xf32>
    %6 = arith.addf %3, %5 : vector<64x32xf32>
    %cst_6 = arith.constant 0.000000e+00 : f32
    %7 = vector.broadcast %cst_6 : f32 to vector<64x32xf32>
    %8 = arith.maximumf %6, %7 : vector<64x32xf32>
    %9 = vector.shape_cast %8 : vector<64x32xf32> to vector<8x8x32xf32>
    %c0_7 = arith.constant 0 : index
    %c0_8 = arith.constant 0 : index
    %10 = vector.load %arg3[%c0_7, %c0_8] : memref<1x32xf32, #tpu.memory_space<vmem>>, vector<1x32xf32>
    %cst_9 = arith.constant 0.000000e+00 : f32
    %11 = vector.broadcast %cst_9 : f32 to vector<1x32xf32>
    %12 = arith.maximumf %10, %11 : vector<1x32xf32>
    %13 = vector.shape_cast %12 : vector<1x32xf32> to vector<1x1x32xf32>
    %14 = vector.shape_cast %13 : vector<1x1x32xf32> to vector<1x1x32xf32>
    %15 = vector.broadcast %14 : vector<1x1x32xf32> to vector<8x1x32xf32>
    %cst_10 = arith.constant 0.000000e+00 : f32
    %16 = vector.broadcast %cst_10 : f32 to vector<8x1x32xf32>
    %17 = tpu.concatenate %16, %15 in 1 : vector<8x1x32xf32>, vector<8x1x32xf32> -> vector<8x2x32xf32>
    %18 = tpu.concatenate %15, %16 in 1 : vector<8x1x32xf32>, vector<8x1x32xf32> -> vector<8x2x32xf32>
    %cst_11 = arith.constant 0.000000e+00 : f32
    %19 = vector.broadcast %cst_11 : f32 to vector<8x2x32xf32>
    %c0_12 = arith.constant 0 : index
    %c0_13 = arith.constant 0 : index
    %c0_14 = arith.constant 0 : index
    %20 = vector.load %arg11[%c0_12, %c0_13, %c0_14] : memref<8x18x32xf32, #tpu.memory_space<vmem>>, vector<8x2x32xf32>
    tpu.vector_store %arg11[%c0_12, %c0_13, %c0_14], %17 {strides = array<i32>} : memref<8x18x32xf32, #tpu.memory_space<vmem>>, vector<8x2x32xf32>,
    %c0_15 = arith.constant 0 : index
    %c2 = arith.constant 2 : index
    %c0_16 = arith.constant 0 : index
    %21 = vector.load %arg11[%c0_15, %c2, %c0_16] : memref<8x18x32xf32, #tpu.memory_space<vmem>>, vector<8x8x32xf32>
    tpu.vector_store %arg11[%c0_15, %c2, %c0_16], %9 {strides = array<i32>} : memref<8x18x32xf32, #tpu.memory_space<vmem>>, vector<8x8x32xf32>,
    %c0_17 = arith.constant 0 : index
    %c10 = arith.constant 10 : index
    %c0_18 = arith.constant 0 : index
    %22 = vector.load %arg11[%c0_17, %c10, %c0_18] : memref<8x18x32xf32, #tpu.memory_space<vmem>>, vector<8x2x32xf32>
    tpu.vector_store %arg11[%c0_17, %c10, %c0_18], %18 {strides = array<i32>} : memref<8x18x32xf32, #tpu.memory_space<vmem>>, vector<8x2x32xf32>,
    %c0_19 = arith.constant 0 : index
    %c0_20 = arith.constant 0 : index
    %c0_21 = arith.constant 0 : index
    %23 = vector.load %arg11[%c0_19, %c0_20, %c0_21] : memref<8x18x32xf32, #tpu.memory_space<vmem>>, vector<8x18x32xf32>
    %cst_22 = arith.constant 0.000000e+00 : f32
    %24 = vector.broadcast %cst_22 : f32 to vector<128x32xf32>
    %25 = vector.extract_strided_slice %23 {offsets = [0, 0, 0], sizes = [8, 16, 32], strides = [1, 1, 1]} : vector<8x18x32xf32> to vector<8x16x32xf32>
    %26 = vector.shape_cast %25 : vector<8x16x32xf32> to vector<128x32xf32>
    %c0_23 = arith.constant 0 : index
    %c0_24 = arith.constant 0 : index
    %c0_25 = arith.constant 0 : index
    %27 = vector.load %arg4[%c0_23, %c0_24, %c0_25] : memref<3x32x32xf32, #tpu.memory_space<vmem>>, vector<1x32x32xf32>
    %28 = vector.shape_cast %27 : vector<1x32x32xf32> to vector<32x32xf32>
    %cst_26 = arith.constant dense<0.000000e+00> : vector<128x32xf32>
    %29 = tpu.matmul %26, %28, %cst_26 {dimension_numbers = #tpu.dot_dimension_numbers<[1], [0], [0], [1], [0, 0, 1, 1], [], []>} : vector<128x32xf32>, vector<32x32xf32>, vector<128x32xf32> -> vector<128x32xf32>
    %30 = arith.addf %24, %29 : vector<128x32xf32>
    %31 = vector.extract_strided_slice %23 {offsets = [0, 1, 0], sizes = [8, 16, 32], strides = [1, 1, 1]} : vector<8x18x32xf32> to vector<8x16x32xf32>
    %32 = vector.shape_cast %31 : vector<8x16x32xf32> to vector<128x32xf32>
    %c1 = arith.constant 1 : index
    %c0_27 = arith.constant 0 : index
    %c0_28 = arith.constant 0 : index
    %33 = vector.load %arg4[%c1, %c0_27, %c0_28] : memref<3x32x32xf32, #tpu.memory_space<vmem>>, vector<1x32x32xf32>
    %34 = vector.shape_cast %33 : vector<1x32x32xf32> to vector<32x32xf32>
    %cst_29 = arith.constant dense<0.000000e+00> : vector<128x32xf32>
    %35 = tpu.matmul %32, %34, %cst_29 {dimension_numbers = #tpu.dot_dimension_numbers<[1], [0], [0], [1], [0, 0, 1, 1], [], []>} : vector<128x32xf32>, vector<32x32xf32>, vector<128x32xf32> -> vector<128x32xf32>
    %36 = arith.addf %30, %35 : vector<128x32xf32>
    %37 = vector.extract_strided_slice %23 {offsets = [0, 2, 0], sizes = [8, 16, 32], strides = [1, 1, 1]} : vector<8x18x32xf32> to vector<8x16x32xf32>
    %38 = vector.shape_cast %37 : vector<8x16x32xf32> to vector<128x32xf32>
    %c2_30 = arith.constant 2 : index
    %c0_31 = arith.constant 0 : index
    %c0_32 = arith.constant 0 : index
    %39 = vector.load %arg4[%c2_30, %c0_31, %c0_32] : memref<3x32x32xf32, #tpu.memory_space<vmem>>, vector<1x32x32xf32>
    %40 = vector.shape_cast %39 : vector<1x32x32xf32> to vector<32x32xf32>
    %cst_33 = arith.constant dense<0.000000e+00> : vector<128x32xf32>
    %41 = tpu.matmul %38, %40, %cst_33 {dimension_numbers = #tpu.dot_dimension_numbers<[1], [0], [0], [1], [0, 0, 1, 1], [], []>} : vector<128x32xf32>, vector<32x32xf32>, vector<128x32xf32> -> vector<128x32xf32>
    %42 = arith.addf %36, %41 : vector<128x32xf32>
    %c0_34 = arith.constant 0 : index
    %c0_35 = arith.constant 0 : index
    %43 = vector.load %arg5[%c0_34, %c0_35] : memref<1x32xf32, #tpu.memory_space<vmem>>, vector<1x32xf32>
    %44 = vector.broadcast %43 : vector<1x32xf32> to vector<128x32xf32>
    %45 = arith.addf %42, %44 : vector<128x32xf32>
    %cst_36 = arith.constant 0.000000e+00 : f32
    %46 = vector.broadcast %cst_36 : f32 to vector<128x32xf32>
    %47 = arith.maximumf %45, %46 : vector<128x32xf32>
    %48 = vector.shape_cast %47 : vector<128x32xf32> to vector<8x16x32xf32>
    %c0_37 = arith.constant 0 : index
    %c0_38 = arith.constant 0 : index
    %c0_39 = arith.constant 0 : index
    %49 = vector.load %arg12[%c0_37, %c0_38, %c0_39] : memref<8x19x32xf32, #tpu.memory_space<vmem>>, vector<8x2x32xf32>
    tpu.vector_store %arg12[%c0_37, %c0_38, %c0_39], %19 {strides = array<i32>} : memref<8x19x32xf32, #tpu.memory_space<vmem>>, vector<8x2x32xf32>,
    %50 = vector.extract_strided_slice %48 {offsets = [0, 0, 0], sizes = [8, 10, 32], strides = [1, 1, 1]} : vector<8x16x32xf32> to vector<8x10x32xf32>
    %c0_40 = arith.constant 0 : index
    %c2_41 = arith.constant 2 : index
    %c0_42 = arith.constant 0 : index
    %51 = vector.load %arg12[%c0_40, %c2_41, %c0_42] : memref<8x19x32xf32, #tpu.memory_space<vmem>>, vector<8x10x32xf32>
    tpu.vector_store %arg12[%c0_40, %c2_41, %c0_42], %50 {strides = array<i32>} : memref<8x19x32xf32, #tpu.memory_space<vmem>>, vector<8x10x32xf32>,
    %c0_43 = arith.constant 0 : index
    %c12 = arith.constant 12 : index
    %c0_44 = arith.constant 0 : index
    %52 = vector.load %arg12[%c0_43, %c12, %c0_44] : memref<8x19x32xf32, #tpu.memory_space<vmem>>, vector<8x2x32xf32>
    tpu.vector_store %arg12[%c0_43, %c12, %c0_44], %19 {strides = array<i32>} : memref<8x19x32xf32, #tpu.memory_space<vmem>>, vector<8x2x32xf32>,
    %c0_45 = arith.constant 0 : index
    %c0_46 = arith.constant 0 : index
    %c0_47 = arith.constant 0 : index
    %53 = vector.load %arg12[%c0_45, %c0_46, %c0_47] : memref<8x19x32xf32, #tpu.memory_space<vmem>>, vector<8x19x32xf32>
    %cst_48 = arith.constant 0.000000e+00 : f32
    %54 = vector.broadcast %cst_48 : f32 to vector<128x32xf32>
    %55 = vector.extract_strided_slice %53 {offsets = [0, 1, 0], sizes = [8, 16, 32], strides = [1, 1, 1]} : vector<8x19x32xf32> to vector<8x16x32xf32>
    %56 = vector.shape_cast %55 : vector<8x16x32xf32> to vector<128x32xf32>
    %c0_49 = arith.constant 0 : index
    %c0_50 = arith.constant 0 : index
    %c0_51 = arith.constant 0 : index
    %57 = vector.load %arg6[%c0_49, %c0_50, %c0_51] : memref<3x32x32xf32, #tpu.memory_space<vmem>>, vector<1x32x32xf32>
    %58 = vector.shape_cast %57 : vector<1x32x32xf32> to vector<32x32xf32>
    %cst_52 = arith.constant dense<0.000000e+00> : vector<128x32xf32>
    %59 = tpu.matmul %56, %58, %cst_52 {dimension_numbers = #tpu.dot_dimension_numbers<[1], [0], [0], [1], [0, 0, 1, 1], [], []>} : vector<128x32xf32>, vector<32x32xf32>, vector<128x32xf32> -> vector<128x32xf32>
    %60 = arith.addf %54, %59 : vector<128x32xf32>
    %61 = vector.extract_strided_slice %53 {offsets = [0, 2, 0], sizes = [8, 16, 32], strides = [1, 1, 1]} : vector<8x19x32xf32> to vector<8x16x32xf32>
    %62 = vector.shape_cast %61 : vector<8x16x32xf32> to vector<128x32xf32>
    %c1_53 = arith.constant 1 : index
    %c0_54 = arith.constant 0 : index
    %c0_55 = arith.constant 0 : index
    %63 = vector.load %arg6[%c1_53, %c0_54, %c0_55] : memref<3x32x32xf32, #tpu.memory_space<vmem>>, vector<1x32x32xf32>
    %64 = vector.shape_cast %63 : vector<1x32x32xf32> to vector<32x32xf32>
    %cst_56 = arith.constant dense<0.000000e+00> : vector<128x32xf32>
    %65 = tpu.matmul %62, %64, %cst_56 {dimension_numbers = #tpu.dot_dimension_numbers<[1], [0], [0], [1], [0, 0, 1, 1], [], []>} : vector<128x32xf32>, vector<32x32xf32>, vector<128x32xf32> -> vector<128x32xf32>
    %66 = arith.addf %60, %65 : vector<128x32xf32>
    %67 = vector.extract_strided_slice %53 {offsets = [0, 3, 0], sizes = [8, 16, 32], strides = [1, 1, 1]} : vector<8x19x32xf32> to vector<8x16x32xf32>
    %68 = vector.shape_cast %67 : vector<8x16x32xf32> to vector<128x32xf32>
    %c2_57 = arith.constant 2 : index
    %c0_58 = arith.constant 0 : index
    %c0_59 = arith.constant 0 : index
    %69 = vector.load %arg6[%c2_57, %c0_58, %c0_59] : memref<3x32x32xf32, #tpu.memory_space<vmem>>, vector<1x32x32xf32>
    %70 = vector.shape_cast %69 : vector<1x32x32xf32> to vector<32x32xf32>
    %cst_60 = arith.constant dense<0.000000e+00> : vector<128x32xf32>
    %71 = tpu.matmul %68, %70, %cst_60 {dimension_numbers = #tpu.dot_dimension_numbers<[1], [0], [0], [1], [0, 0, 1, 1], [], []>} : vector<128x32xf32>, vector<32x32xf32>, vector<128x32xf32> -> vector<128x32xf32>
    %72 = arith.addf %66, %71 : vector<128x32xf32>
    %c0_61 = arith.constant 0 : index
    %c0_62 = arith.constant 0 : index
    %73 = vector.load %arg7[%c0_61, %c0_62] : memref<1x32xf32, #tpu.memory_space<vmem>>, vector<1x32xf32>
    %74 = vector.broadcast %73 : vector<1x32xf32> to vector<128x32xf32>
    %75 = arith.addf %72, %74 : vector<128x32xf32>
    %cst_63 = arith.constant 0.000000e+00 : f32
    %76 = vector.broadcast %cst_63 : f32 to vector<128x32xf32>
    %77 = arith.maximumf %75, %76 : vector<128x32xf32>
    %78 = vector.shape_cast %77 : vector<128x32xf32> to vector<8x16x32xf32>
    %79 = vector.extract_strided_slice %78 {offsets = [0, 0, 0], sizes = [8, 10, 32], strides = [1, 1, 1]} : vector<8x16x32xf32> to vector<8x10x32xf32>
    %cst_64 = arith.constant dense<0.000000e+00> : vector<8x32xf32>
    %80 = vector.multi_reduction <add>, %79, %cst_64 [1] : vector<8x10x32xf32> to vector<8x32xf32>
    %c0_65 = arith.constant 0 : index
    %c0_66 = arith.constant 0 : index
    %81 = vector.load %arg8[%c0_65, %c0_66] : memref<1x32xf32, #tpu.memory_space<vmem>>, vector<1x32xf32>
    %82 = vector.broadcast %81 : vector<1x32xf32> to vector<8x32xf32>
    %83 = arith.mulf %80, %82 : vector<8x32xf32>
    %cst_67 = arith.constant dense<0.000000e+00> : vector<8xf32>
    %84 = vector.multi_reduction <add>, %83, %cst_67 [1] : vector<8x32xf32> to vector<8xf32>
    %c0_68 = arith.constant 0 : index
    %85 = memref.load %arg9[%c0_68] : memref<1xf32, #tpu.memory_space<smem>>
    %86 = vector.broadcast %85 : f32 to vector<8xf32>
    %87 = arith.addf %84, %86 : vector<8xf32>
    %88 = vector.shape_cast %87 : vector<8xf32> to vector<1x1x8xf32>
    %c0_69 = arith.constant 0 : index
    %c0_70 = arith.constant 0 : index
    %c0_71 = arith.constant 0 : index
    %89 = vector.load %arg10[%c0_69, %c0_70, %c0_71] : memref<1x1x8xf32, #tpu.memory_space<vmem>>, vector<1x1x8xf32>
    tpu.vector_store %arg10[%c0_69, %c0_70, %c0_71], %88 {strides = array<i32>} : memref<1x1x8xf32, #tpu.memory_space<vmem>>, vector<1x1x8xf32>,
    return
  }
  func.func @transform_0(%arg0: i32) -> (i32, i32, i32) {
    %c0_i32 = arith.constant 0 : i32
    %c0_i32_0 = arith.constant 0 : i32
    %c0_i32_1 = arith.constant 0 : i32
    return %arg0, %c0_i32, %c0_i32_0 : i32, i32, i32
  }
  func.func @transform_1(%arg0: i32) -> (i32, i32) {
    %c0_i32 = arith.constant 0 : i32
    %c0_i32_0 = arith.constant 0 : i32
    %c0_i32_1 = arith.constant 0 : i32
    return %c0_i32, %c0_i32_0 : i32, i32
  }
  func.func @transform_2(%arg0: i32) -> (i32, i32) {
    %c0_i32 = arith.constant 0 : i32
    %c0_i32_0 = arith.constant 0 : i32
    %c0_i32_1 = arith.constant 0 : i32
    return %c0_i32, %c0_i32_0 : i32, i32
  }
  func.func @transform_3(%arg0: i32) -> (i32, i32, i32) {
    %c0_i32 = arith.constant 0 : i32
    %c0_i32_0 = arith.constant 0 : i32
    %c0_i32_1 = arith.constant 0 : i32
    %c0_i32_2 = arith.constant 0 : i32
    return %c0_i32, %c0_i32_0, %c0_i32_1 : i32, i32, i32
  }
  func.func @transform_4(%arg0: i32) -> (i32, i32) {
    %c0_i32 = arith.constant 0 : i32
    %c0_i32_0 = arith.constant 0 : i32
    %c0_i32_1 = arith.constant 0 : i32
    return %c0_i32, %c0_i32_0 : i32, i32
  }
  func.func @transform_5(%arg0: i32) -> (i32, i32, i32) {
    %c0_i32 = arith.constant 0 : i32
    %c0_i32_0 = arith.constant 0 : i32
    %c0_i32_1 = arith.constant 0 : i32
    %c0_i32_2 = arith.constant 0 : i32
    return %c0_i32, %c0_i32_0, %c0_i32_1 : i32, i32, i32
  }
  func.func @transform_6(%arg0: i32) -> (i32, i32) {
    %c0_i32 = arith.constant 0 : i32
    %c0_i32_0 = arith.constant 0 : i32
    %c0_i32_1 = arith.constant 0 : i32
    return %c0_i32, %c0_i32_0 : i32, i32
  }
  func.func @transform_7(%arg0: i32) -> (i32, i32) {
    %c0_i32 = arith.constant 0 : i32
    %c0_i32_0 = arith.constant 0 : i32
    %c0_i32_1 = arith.constant 0 : i32
    return %c0_i32, %c0_i32_0 : i32, i32
  }
  func.func @transform_8(%arg0: i32) -> i32 {
    %c0_i32 = arith.constant 0 : i32
    %c0_i32_0 = arith.constant 0 : i32
    return %c0_i32 : i32
  }
  func.func @transform_9(%arg0: i32) -> (i32, i32, i32) {
    %c0_i32 = arith.constant 0 : i32
    %c0_i32_0 = arith.constant 0 : i32
    %c0_i32_1 = arith.constant 0 : i32
    return %arg0, %c0_i32, %c0_i32_0 : i32, i32, i32
  }
}

</mosaic_0001>

<llo_original>
// kernel: tpu_custom_call.1
$region0: #{tpu_custom_call.1}
  #allocation0 [shape = 'u32[]', space=smem, size = 0x4, offset = 0x4, fixed_abs, tag = 'smem constant byte address 0x4 - core index']
  #allocation1 [shape = 'u32[144,128]{1,0:T(1,128)}', space=vmem, size = 0x12000, scoped, tag = 'internal scratch']
  #allocation2 [shape = 'f32[8,18,32]{2,1,0:T(8,128)}', space=vmem, size = 0x18000, scoped, tag = 'scratch operand']
  #allocation3 [shape = 'f32[8,19,32]{2,1,0:T(8,128)}', space=vmem, size = 0x18000, scoped, tag = 'scratch operand']
  #allocation4 [shape = 'f32[1]{0:T(128)S(6)}', space=smem, size = 0x200, scoped, tag = 'scoped memory for tpu_custom_call.1']
  %s0 = inlined_call_operand.vmem [shape: f32[8,8,4], index: 0, kind: input, shape index: {}]
  %s1 = inlined_call_operand.vmem [shape: f32[4,32], index: 1, kind: input, shape index: {}]
  %s2 = inlined_call_operand.vmem [shape: f32[1,32], index: 2, kind: input, shape index: {}]
  %s3 = inlined_call_operand.vmem [shape: f32[3,32,32], index: 3, kind: input, shape index: {}]
  %s4 = inlined_call_operand.vmem [shape: f32[1,32], index: 4, kind: input, shape index: {}]
  %s5 = inlined_call_operand.hbm [shape: f32[3,32,32], index: 5, kind: input, shape index: {}]
  %s6 = inlined_call_operand.vmem [shape: f32[1,32], index: 6, kind: input, shape index: {}]
  %s7 = inlined_call_operand.vmem [shape: f32[1,32], index: 7, kind: input, shape index: {}]
  %s8 = inlined_call_operand.<no memory space> [shape: f32[1], index: 8, kind: input, shape index: {}]
  %s9 = inlined_call_operand.hbm [shape: f32[1,1,8], index: 9, kind: output, shape index: {}]
  %s10 = sld [smem:[#allocation0]]
  $region50: #{tpu_custom_call.1} parent=0
    _
  %s12 = ssub.s32 1, %s10
  %s13 = scalar_select 0, %s12, %s10
  %14 = sst [smem:[#allocation4]] %s8
  $region1: #{tpu_custom_call.1} parent=0
    #allocation5 [shape = 'u8[49152]{0}', space=vmem, size = 0xc000, scoped, tag = 'input window, operand 5, single buffered']
    #allocation6 [shape = 's32[1]{0}', space=sflag, size = 0x4, scoped, tag = 'scoped memory for tpu_custom_call.1']
    #allocation7 [shape = 's32[1]{0}', space=sflag, size = 0x4, scoped, tag = 'scoped memory for tpu_custom_call.1']
    #allocation8 [shape = 'u8[512]{0}', space=vmem, size = 0x400, scoped, tag = 'output window, operand 0, single buffered']
    %15 = vsyncpa [#allocation6], 0
    %16 = vsyncpa [#allocation7], 0
    // Predicated region
    $region2: #{tpu_custom_call.1} parent=1 // pred_check
      _
    $region3: #{tpu_custom_call.1} parent=1 // pred_check_branch
      %18 = sbr.rel (0) target = $region5
    $region4: #{tpu_custom_call.1} parent=1 // pred_region
      _
    $region5: #{tpu_custom_call.1} parent=1 // pred_fallthru
      _
    // Predicated region
    $region6: #{tpu_custom_call.1} parent=1 // pred_check
      _
    $region7: #{tpu_custom_call.1} parent=1 // pred_check_branch
      %20 = sbr.rel (0) target = $region9
    $region8: #{tpu_custom_call.1} parent=1 // pred_region
      _
    $region9: #{tpu_custom_call.1} parent=1 // pred_fallthru
      _
    // Predicated region
    $region10: #{tpu_custom_call.1} parent=1 // pred_check
      _
    $region11: #{tpu_custom_call.1} parent=1 // pred_check_branch
      %22 = sbr.rel (0) target = $region13
    $region12: #{tpu_custom_call.1} parent=1 // pred_region
      _
    $region13: #{tpu_custom_call.1} parent=1 // pred_fallthru
      _
    // Predicated region
    $region14: #{tpu_custom_call.1} parent=1 // pred_check
      _
    $region15: #{tpu_custom_call.1} parent=1 // pred_check_branch
      %24 = sbr.rel (0) target = $region17
    $region16: #{tpu_custom_call.1} parent=1 // pred_region
      _
    $region17: #{tpu_custom_call.1} parent=1 // pred_fallthru
      _
    // Predicated region
    $region18: #{tpu_custom_call.1} parent=1 // pred_check
      _
    $region19: #{tpu_custom_call.1} parent=1 // pred_check_branch
      %26 = sbr.rel (0) target = $region21
    $region20: #{tpu_custom_call.1} parent=1 // pred_region
      _
    $region21: #{tpu_custom_call.1} parent=1 // pred_fallthru
      _
    // Predicated region
    $region22: #{tpu_custom_call.1} parent=1 // pred_check
      _
    $region23: #{tpu_custom_call.1} parent=1 // pred_check_branch
      %28 = sbr.rel (0) target = $region25
    $region24: #{tpu_custom_call.1} parent=1 // pred_region
      %s30 = ssub.s32 1536, 1536
      %31 = vsyncadd [#allocation6], %s30
      %s32 = sshll.u32 [#allocation5], 4
      %s33 = int_to_ptr.vmem [resolvable:$true] %s32
      %38 = dma.hbm_to_vmem [thread:$0]  %s5, 1536, %s33, [#allocation6], 128, 128, 8
    $region25: #{tpu_custom_call.1} parent=1 // pred_fallthru
      _
    // Predicated region
    $region26: #{tpu_custom_call.1} parent=1 // pred_check
      _
    $region27: #{tpu_custom_call.1} parent=1 // pred_check_branch
      %40 = sbr.rel (0) target = $region29
    $region28: #{tpu_custom_call.1} parent=1 // pred_region
      _
    $region29: #{tpu_custom_call.1} parent=1 // pred_fallthru
      _
    // Predicated region
    $region30: #{tpu_custom_call.1} parent=1 // pred_check
      _
    $region31: #{tpu_custom_call.1} parent=1 // pred_check_branch
      %42 = sbr.rel (0) target = $region33
    $region32: #{tpu_custom_call.1} parent=1 // pred_region
      _
    $region33: #{tpu_custom_call.1} parent=1 // pred_fallthru
      _
    // Predicated region
    $region34: #{tpu_custom_call.1} parent=1 // pred_check
      _
    $region35: #{tpu_custom_call.1} parent=1 // pred_check_branch
      %44 = sbr.rel (0) target = $region37
    $region36: #{tpu_custom_call.1} parent=1 // pred_region
      _
    $region37: #{tpu_custom_call.1} parent=1 // pred_fallthru
      _
    // Predicated region
    $region38: #{tpu_custom_call.1} parent=1 // pred_check
      _
    $region39: #{tpu_custom_call.1} parent=1 // pred_check_branch
      %46 = sbr.rel (0) target = $region41
    $region40: #{tpu_custom_call.1} parent=1 // pred_region
      %47 = dma.done [#allocation6], 1536
    $region41: #{tpu_custom_call.1} parent=1 // pred_fallthru
      _
    %v48 = vld [vmem:[%s0] sm:$0xff]
    %v49 = vld [vmem:[%s0 + $0x8] sm:$0xff]
    %v50 = vld [vmem:[%s0 + $0x10] sm:$0xff]
    %v51 = vld [vmem:[%s0 + $0x18] sm:$0xff]
    %v52 = vld [vmem:[%s0 + $0x20] sm:$0xff]
    %v53 = vld [vmem:[%s0 + $0x28] sm:$0xff]
    %v54 = vld [vmem:[%s0 + $0x30] sm:$0xff]
    %v55 = vld [vmem:[%s0 + $0x38] sm:$0xff]
    %v56 = vld [vmem:[%s1] sm:$0xf]
    %v57 = vld [vmem:[%s2] sm:$0x1]
    %v59 = vlaneseq
    %v60 = vshrl.u32 %v59, 7
    %v61 = vsub.s32 0, %v60
    %v62 = vrot.slane %v57, %v61
    %vm64 = vcmask 31744
    %v66 = vsel %vm64, %v48, 0
    %v69 = vsel %vm64, %v49, 0
    %v72 = vsel %vm64, %v50, 0
    %v75 = vsel %vm64, %v51, 0
    %v78 = vsel %vm64, %v52, 0
    %v81 = vsel %vm64, %v53, 0
    %v84 = vsel %vm64, %v54, 0
    %v87 = vsel %vm64, %v55, 0
    %vm89 = vcmask 1043456
    %v91 = vsel %vm89, %v56, 0
    %93 = vmatprep.subr.mxu0 0.0
    %94 = vmatpush1.msra.mxu0 0.0
    %95 = vmatprep.subr.mxu0 0.0
    %96 = vmatpush1.msra.mxu0 0.0
    %97 = vmatprep.subr.mxu0 0.0
    %98 = vmatpush1.msra.mxu0 0.0
    %99 = vmatprep.subr.mxu0 0.0
    %100 = vmatpush1.msra.mxu0 0.0
    %101 = vmatprep.subr.mxu0 0.0
    %102 = vmatpush1.msra.mxu0 0.0
    %103 = vmatprep.subr.mxu0 0.0
    %104 = vmatpush1.msra.mxu0 0.0
    %105 = vmatprep.subr.mxu0 0.0
    %106 = vmatpush1.msra.mxu0 0.0
    %107 = vmatprep.subr.mxu0 0.0
    %108 = vmatpush1.msra.mxu0 0.0
    %109 = vmatprep.subr.mxu0 0.0
    %110 = vmatpush1.msra.mxu0 0.0
    %111 = vmatprep.subr.mxu0 0.0
    %112 = vmatpush1.msra.mxu0 0.0
    %113 = vmatprep.subr.mxu0 0.0
    %114 = vmatpush1.msra.mxu0 0.0
    %115 = vmatprep.subr.mxu0 0.0
    %116 = vmatpush1.msra.mxu0 0.0
    %117 = vmatprep.subr.mxu0 0.0
    %118 = vmatpush1.msra.mxu0 0.0
    %119 = vmatprep.subr.mxu0 0.0
    %120 = vmatpush1.msra.mxu0 0.0
    %121 = vmatprep.subr.mxu0 0.0
    %122 = vmatpush1.msra.mxu0 0.0
    %123 = vmatprep.subr.mxu0 0.0
    %124 = vmatpush1.msra.mxu0 %v91
    %125 = vmatprep.subr.mxu0 0.0
    %126 = vmatpush2.msra.mxu0 0.0
    %127 = vmatprep.subr.mxu0 0.0
    %128 = vmatpush2.msra.mxu0 0.0
    %129 = vmatprep.subr.mxu0 0.0
    %130 = vmatpush2.msra.mxu0 0.0
    %131 = vmatprep.subr.mxu0 0.0
    %132 = vmatpush2.msra.mxu0 0.0
    %133 = vmatprep.subr.mxu0 0.0
    %134 = vmatpush2.msra.mxu0 0.0
    %135 = vmatprep.subr.mxu0 0.0
    %136 = vmatpush2.msra.mxu0 0.0
    %137 = vmatprep.subr.mxu0 0.0
    %138 = vmatpush2.msra.mxu0 0.0
    %139 = vmatprep.subr.mxu0 0.0
    %140 = vmatpush2.msra.mxu0 0.0
    %141 = vmatprep.subr.mxu0 0.0
    %142 = vmatpush2.msra.mxu0 0.0
    %143 = vmatprep.subr.mxu0 0.0
    %144 = vmatpush2.msra.mxu0 0.0
    %145 = vmatprep.subr.mxu0 0.0
    %146 = vmatpush2.msra.mxu0 0.0
    %147 = vmatprep.subr.mxu0 0.0
    %148 = vmatpush2.msra.mxu0 0.0
    %149 = vmatprep.subr.mxu0 0.0
    %150 = vmatpush2.msra.mxu0 0.0
    %151 = vmatprep.subr.mxu0 0.0
    %152 = vmatpush2.msra.mxu0 0.0
    %153 = vmatprep.subr.mxu0 0.0
    %154 = vmatpush2.msra.mxu0 0.0
    %155 = vmatprep.subr.mxu0 0.0
    %156 = vmatpush2.msra.mxu0 0.0
    %157 = vmatprep.mubr.f32.mxu0 0.0
    %158 = vmatmul.mubr.f32.gmra.mxu0 %v66
    %v159 = vpop.f32.mrf.mxu0
    %v160 = vadd.f32 %v62, %v159
    %v161 = vpop.f32.mrf.mxu0
    %162 = vmatprep.mubr.f32.mxu0 0.0
    %163 = vmatmul.mubr.f32.gmra.mxu0 %v69
    %v164 = vpop.f32.mrf.mxu0
    %v165 = vadd.f32 %v62, %v164
    %v166 = vpop.f32.mrf.mxu0
    %167 = vmatprep.mubr.f32.mxu0 0.0
    %168 = vmatmul.mubr.f32.gmra.mxu0 %v72
    %v169 = vpop.f32.mrf.mxu0
    %v170 = vadd.f32 %v62, %v169
    %v171 = vpop.f32.mrf.mxu0
    %172 = vmatprep.mubr.f32.mxu0 0.0
    %173 = vmatmul.mubr.f32.gmra.mxu0 %v75
    %v174 = vpop.f32.mrf.mxu0
    %v175 = vadd.f32 %v62, %v174
    %v176 = vpop.f32.mrf.mxu0
    %177 = vmatprep.mubr.f32.mxu0 0.0
    %178 = vmatmul.mubr.f32.gmra.mxu0 %v78
    %v179 = vpop.f32.mrf.mxu0
    %v180 = vadd.f32 %v62, %v179
    %v181 = vpop.f32.mrf.mxu0
    %182 = vmatprep.mubr.f32.mxu0 0.0
    %183 = vmatmul.mubr.f32.gmra.mxu0 %v81
    %v184 = vpop.f32.mrf.mxu0
    %v185 = vadd.f32 %v62, %v184
    %v186 = vpop.f32.mrf.mxu0
    %187 = vmatprep.mubr.f32.mxu0 0.0
    %188 = vmatmul.mubr.f32.gmra.mxu0 %v84
    %v189 = vpop.f32.mrf.mxu0
    %v190 = vadd.f32 %v62, %v189
    %v191 = vpop.f32.mrf.mxu0
    %192 = vmatprep.mubr.f32.mxu0 0.0
    %193 = vmatmul.mubr.f32.gmra.mxu0 %v87
    %v194 = vpop.f32.mrf.mxu0
    %v195 = vadd.f32 %v62, %v194
    %v196 = vpop.f32.mrf.mxu0
    %197 = vdwg.mxu0
    %v198 = vmax.f32 %v160, 0.0
    %v199 = vmax.f32 %v165, 0.0
    %v200 = vmax.f32 %v170, 0.0
    %v201 = vmax.f32 %v175, 0.0
    %v202 = vmax.f32 %v180, 0.0
    %v203 = vmax.f32 %v185, 0.0
    %v204 = vmax.f32 %v190, 0.0
    %v205 = vmax.f32 %v195, 0.0
    %v206 = vmax.f32 %v57, 0.0
    %v208 = vlaneseq
    %v209 = vshrl.u32 %v208, 7
    %v210 = vsub.s32 0, %v209
    %v211 = vrot.slane %v206, %v210
    %vm213 = vcmask 1040384
    %v214 = vsel %vm213, 0.0, %v211
    %v215 = vsel %vm213, %v206, 0.0
    %vm216 = vcmask 254976
    %217 = vst.msk [vmem:[#allocation2] sm:$0x3] %vm216, %v214
    %218 = vst.msk [vmem:[#allocation2 + $0x18] sm:$0x3] %vm216, %v214
    %219 = vst.msk [vmem:[#allocation2 + $0x30] sm:$0x3] %vm216, %v214
    %220 = vst.msk [vmem:[#allocation2 + $0x48] sm:$0x3] %vm216, %v214
    %221 = vst.msk [vmem:[#allocation2 + $0x60] sm:$0x3] %vm216, %v214
    %222 = vst.msk [vmem:[#allocation2 + $0x78] sm:$0x3] %vm216, %v214
    %223 = vst.msk [vmem:[#allocation2 + $0x90] sm:$0x3] %vm216, %v214
    %224 = vst.msk [vmem:[#allocation2 + $0xa8] sm:$0x3] %vm216, %v214
    %vm225 = vcmask 261120
    %226 = vst.msk [vmem:[#allocation2 + $0x2] sm:$0xff] %vm225, %v198
    %227 = vst.msk [vmem:[#allocation2 + $0x1a] sm:$0xff] %vm225, %v199
    %228 = vst.msk [vmem:[#allocation2 + $0x32] sm:$0xff] %vm225, %v200
    %229 = vst.msk [vmem:[#allocation2 + $0x4a] sm:$0xff] %vm225, %v201
    %230 = vst.msk [vmem:[#allocation2 + $0x62] sm:$0xff] %vm225, %v202
    %231 = vst.msk [vmem:[#allocation2 + $0x7a] sm:$0xff] %vm225, %v203
    %232 = vst.msk [vmem:[#allocation2 + $0x92] sm:$0xff] %vm225, %v204
    %233 = vst.msk [vmem:[#allocation2 + $0xaa] sm:$0xff] %vm225, %v205
    %234 = vst.msk [vmem:[#allocation2 + $0xa] sm:$0x3] %vm216, %v215
    %235 = vst.msk [vmem:[#allocation2 + $0x22] sm:$0x3] %vm216, %v215
    %236 = vst.msk [vmem:[#allocation2 + $0x3a] sm:$0x3] %vm216, %v215
    %237 = vst.msk [vmem:[#allocation2 + $0x52] sm:$0x3] %vm216, %v215
    %238 = vst.msk [vmem:[#allocation2 + $0x6a] sm:$0x3] %vm216, %v215
    %239 = vst.msk [vmem:[#allocation2 + $0x82] sm:$0x3] %vm216, %v215
    %240 = vst.msk [vmem:[#allocation2 + $0x9a] sm:$0x3] %vm216, %v215
    %241 = vst.msk [vmem:[#allocation2 + $0xb2] sm:$0x3] %vm216, %v215
    %v242 = vld [vmem:[#allocation2] sm:$0xff]
    %v243 = vld [vmem:[#allocation2 + $0x8] sm:$0xff]
    %v244 = vld [vmem:[#allocation2 + $0x10] sm:$0x3]
    %v245 = vld [vmem:[#allocation2 + $0x18] sm:$0xff]
    %v246 = vld [vmem:[#allocation2 + $0x20] sm:$0xff]
    %v247 = vld [vmem:[#allocation2 + $0x28] sm:$0x3]
    %v248 = vld [vmem:[#allocation2 + $0x30] sm:$0xff]
    %v249 = vld [vmem:[#allocation2 + $0x38] sm:$0xff]
    %v250 = vld [vmem:[#allocation2 + $0x40] sm:$0x3]
    %v251 = vld [vmem:[#allocation2 + $0x48] sm:$0xff]
    %v252 = vld [vmem:[#allocation2 + $0x50] sm:$0xff]
    %v253 = vld [vmem:[#allocation2 + $0x58] sm:$0x3]
    %v254 = vld [vmem:[#allocation2 + $0x60] sm:$0xff]
    %v255 = vld [vmem:[#allocation2 + $0x68] sm:$0xff]
    %v256 = vld [vmem:[#allocation2 + $0x70] sm:$0x3]
    %v257 = vld [vmem:[#allocation2 + $0x78] sm:$0xff]
    %v258 = vld [vmem:[#allocation2 + $0x80] sm:$0xff]
    %v259 = vld [vmem:[#allocation2 + $0x88] sm:$0x3]
    %v260 = vld [vmem:[#allocation2 + $0x90] sm:$0xff]
    %v261 = vld [vmem:[#allocation2 + $0x98] sm:$0xff]
    %v262 = vld [vmem:[#allocation2 + $0xa0] sm:$0x3]
    %v263 = vld [vmem:[#allocation2 + $0xa8] sm:$0xff]
    %v264 = vld [vmem:[#allocation2 + $0xb0] sm:$0xff]
    %v265 = vld [vmem:[#allocation2 + $0xb8] sm:$0x3]
    %v266 = vld [vmem:[%s3] sm:$0xff]
    %v267 = vld [vmem:[%s3 + $0x8] sm:$0xff]
    %v268 = vld [vmem:[%s3 + $0x10] sm:$0xff]
    %v269 = vld [vmem:[%s3 + $0x18] sm:$0xff]
    %vm294 = vcmask 1046528
    %v295 = vrot.slane %v242, 1
    %v296 = vrot.slane %v243, 1
    %v297 = vsel %vm294, %v295, %v296
    %v298 = vrot.slane %v244, 1
    %v299 = vsel %vm294, %v296, %v298
    %v300 = vrot.slane %v245, 1
    %v301 = vrot.slane %v246, 1
    %v302 = vsel %vm294, %v300, %v301
    %v303 = vrot.slane %v247, 1
    %v304 = vsel %vm294, %v301, %v303
    %v305 = vrot.slane %v248, 1
    %v306 = vrot.slane %v249, 1
    %v307 = vsel %vm294, %v305, %v306
    %v308 = vrot.slane %v250, 1
    %v309 = vsel %vm294, %v306, %v308
    %v310 = vrot.slane %v251, 1
    %v311 = vrot.slane %v252, 1
    %v312 = vsel %vm294, %v310, %v311
    %v313 = vrot.slane %v253, 1
    %v314 = vsel %vm294, %v311, %v313
    %v315 = vrot.slane %v254, 1
    %v316 = vrot.slane %v255, 1
    %v317 = vsel %vm294, %v315, %v316
    %v318 = vrot.slane %v256, 1
    %v319 = vsel %vm294, %v316, %v318
    %v320 = vrot.slane %v257, 1
    %v321 = vrot.slane %v258, 1
    %v322 = vsel %vm294, %v320, %v321
    %v323 = vrot.slane %v259, 1
    %v324 = vsel %vm294, %v321, %v323
    %v325 = vrot.slane %v260, 1
    %v326 = vrot.slane %v261, 1
    %v327 = vsel %vm294, %v325, %v326
    %v328 = vrot.slane %v262, 1
    %v329 = vsel %vm294, %v326, %v328
    %v330 = vrot.slane %v263, 1
    %v331 = vrot.slane %v264, 1
    %v332 = vsel %vm294, %v330, %v331
    %v333 = vrot.slane %v265, 1
    %v334 = vsel %vm294, %v331, %v333
    %s335 = scalar_lea.vmem %s3, 32
    %v336 = vld [vmem:[%s335] sm:$0xff]
    %v337 = vld [vmem:[%s335 + $0x8] sm:$0xff]
    %v338 = vld [vmem:[%s335 + $0x10] sm:$0xff]
    %v339 = vld [vmem:[%s335 + $0x18] sm:$0xff]
    %v340 = vsel %vm225, %v297, 0
    %v342 = vsel %vm225, %v299, 0
    %v344 = vsel %vm225, %v302, 0
    %v346 = vsel %vm225, %v304, 0
    %v348 = vsel %vm225, %v307, 0
    %v350 = vsel %vm225, %v309, 0
    %v352 = vsel %vm225, %v312, 0
    %v354 = vsel %vm225, %v314, 0
    %v356 = vsel %vm225, %v317, 0
    %v358 = vsel %vm225, %v319, 0
    %v360 = vsel %vm225, %v322, 0
    %v362 = vsel %vm225, %v324, 0
    %v364 = vsel %vm225, %v327, 0
    %v366 = vsel %vm225, %v329, 0
    %v368 = vsel %vm225, %v332, 0
    %v370 = vsel %vm225, %v334, 0
    %372 = vmatprep.subr.mxu0 0.0
    %373 = vmatpush1.msra.mxu0 0.0
    %374 = vmatprep.subr.mxu0 0.0
    %375 = vmatpush1.msra.mxu0 0.0
    %376 = vmatprep.subr.mxu0 0.0
    %377 = vmatpush1.msra.mxu0 0.0
    %378 = vmatprep.subr.mxu0 0.0
    %379 = vmatpush1.msra.mxu0 0.0
    %380 = vmatprep.subr.mxu0 0.0
    %381 = vmatpush1.msra.mxu0 0.0
    %382 = vmatprep.subr.mxu0 0.0
    %383 = vmatpush1.msra.mxu0 0.0
    %384 = vmatprep.subr.mxu0 0.0
    %385 = vmatpush1.msra.mxu0 0.0
    %386 = vmatprep.subr.mxu0 0.0
    %387 = vmatpush1.msra.mxu0 0.0
    %388 = vmatprep.subr.mxu0 0.0
    %389 = vmatpush1.msra.mxu0 0.0
    %390 = vmatprep.subr.mxu0 0.0
    %391 = vmatpush1.msra.mxu0 0.0
    %392 = vmatprep.subr.mxu0 0.0
    %393 = vmatpush1.msra.mxu0 0.0
    %394 = vmatprep.subr.mxu0 0.0
    %395 = vmatpush1.msra.mxu0 0.0
    %396 = vmatprep.subr.mxu0 0.0
    %397 = vmatpush1.msra.mxu0 %v339
    %398 = vmatprep.subr.mxu0 0.0
    %399 = vmatpush1.msra.mxu0 %v338
    %400 = vmatprep.subr.mxu0 0.0
    %401 = vmatpush1.msra.mxu0 %v337
    %402 = vmatprep.subr.mxu0 0.0
    %403 = vmatpush1.msra.mxu0 %v336
    %404 = vmatprep.subr.mxu0 0.0
    %405 = vmatpush2.msra.mxu0 0.0
    %406 = vmatprep.subr.mxu0 0.0
    %407 = vmatpush2.msra.mxu0 0.0
    %408 = vmatprep.subr.mxu0 0.0
    %409 = vmatpush2.msra.mxu0 0.0
    %410 = vmatprep.subr.mxu0 0.0
    %411 = vmatpush2.msra.mxu0 0.0
    %412 = vmatprep.subr.mxu0 0.0
    %413 = vmatpush2.msra.mxu0 0.0
    %414 = vmatprep.subr.mxu0 0.0
    %415 = vmatpush2.msra.mxu0 0.0
    %416 = vmatprep.subr.mxu0 0.0
    %417 = vmatpush2.msra.mxu0 0.0
    %418 = vmatprep.subr.mxu0 0.0
    %419 = vmatpush2.msra.mxu0 0.0
    %420 = vmatprep.subr.mxu0 0.0
    %421 = vmatpush2.msra.mxu0 0.0
    %422 = vmatprep.subr.mxu0 0.0
    %423 = vmatpush2.msra.mxu0 0.0
    %424 = vmatprep.subr.mxu0 0.0
    %425 = vmatpush2.msra.mxu0 0.0
    %426 = vmatprep.subr.mxu0 0.0
    %427 = vmatpush2.msra.mxu0 0.0
    %428 = vmatprep.subr.mxu0 0.0
    %429 = vmatpush2.msra.mxu0 0.0
    %430 = vmatprep.subr.mxu0 0.0
    %431 = vmatpush2.msra.mxu0 0.0
    %432 = vmatprep.subr.mxu0 0.0
    %433 = vmatpush2.msra.mxu0 0.0
    %434 = vmatprep.subr.mxu0 0.0
    %435 = vmatpush2.msra.mxu0 0.0
    %436 = vmatprep.mubr.f32.mxu0 0.0
    %437 = vmatmul.mubr.f32.gmra.mxu0 %v340
    %v438 = vpop.f32.mrf.mxu0
    %v439 = vadd.f32 0.0, %v438
    %v440 = vpop.f32.mrf.mxu0
    %441 = vmatprep.mubr.f32.mxu0 0.0
    %442 = vmatmul.mubr.f32.gmra.mxu0 %v342
    %v443 = vpop.f32.mrf.mxu0
    %v444 = vadd.f32 0.0, %v443
    %v445 = vpop.f32.mrf.mxu0
    %446 = vmatprep.mubr.f32.mxu0 0.0
    %447 = vmatmul.mubr.f32.gmra.mxu0 %v344
    %v448 = vpop.f32.mrf.mxu0
    %v449 = vadd.f32 0.0, %v448
    %v450 = vpop.f32.mrf.mxu0
    %451 = vmatprep.mubr.f32.mxu0 0.0
    %452 = vmatmul.mubr.f32.gmra.mxu0 %v346
    %v453 = vpop.f32.mrf.mxu0
    %v454 = vadd.f32 0.0, %v453
    %v455 = vpop.f32.mrf.mxu0
    %456 = vmatprep.mubr.f32.mxu0 0.0
    %457 = vmatmul.mubr.f32.gmra.mxu0 %v348
    %v458 = vpop.f32.mrf.mxu0
    %v459 = vadd.f32 0.0, %v458
    %v460 = vpop.f32.mrf.mxu0
    %461 = vmatprep.mubr.f32.mxu0 0.0
    %462 = vmatmul.mubr.f32.gmra.mxu0 %v350
    %v463 = vpop.f32.mrf.mxu0
    %v464 = vadd.f32 0.0, %v463
    %v465 = vpop.f32.mrf.mxu0
    %466 = vmatprep.mubr.f32.mxu0 0.0
    %467 = vmatmul.mubr.f32.gmra.mxu0 %v352
    %v468 = vpop.f32.mrf.mxu0
    %v469 = vadd.f32 0.0, %v468
    %v470 = vpop.f32.mrf.mxu0
    %471 = vmatprep.mubr.f32.mxu0 0.0
    %472 = vmatmul.mubr.f32.gmra.mxu0 %v354
    %v473 = vpop.f32.mrf.mxu0
    %v474 = vadd.f32 0.0, %v473
    %v475 = vpop.f32.mrf.mxu0
    %476 = vmatprep.mubr.f32.mxu0 0.0
    %477 = vmatmul.mubr.f32.gmra.mxu0 %v356
    %v478 = vpop.f32.mrf.mxu0
    %v479 = vadd.f32 0.0, %v478
    %v480 = vpop.f32.mrf.mxu0
    %481 = vmatprep.mubr.f32.mxu0 0.0
    %482 = vmatmul.mubr.f32.gmra.mxu0 %v358
    %v483 = vpop.f32.mrf.mxu0
    %v484 = vadd.f32 0.0, %v483
    %v485 = vpop.f32.mrf.mxu0
    %486 = vmatprep.mubr.f32.mxu0 0.0
    %487 = vmatmul.mubr.f32.gmra.mxu0 %v360
    %v488 = vpop.f32.mrf.mxu0
    %v489 = vadd.f32 0.0, %v488
    %v490 = vpop.f32.mrf.mxu0
    %491 = vmatprep.mubr.f32.mxu0 0.0
    %492 = vmatmul.mubr.f32.gmra.mxu0 %v362
    %v493 = vpop.f32.mrf.mxu0
    %v494 = vadd.f32 0.0, %v493
    %v495 = vpop.f32.mrf.mxu0
    %496 = vmatprep.mubr.f32.mxu0 0.0
    %497 = vmatmul.mubr.f32.gmra.mxu0 %v364
    %v498 = vpop.f32.mrf.mxu0
    %v499 = vadd.f32 0.0, %v498
    %v500 = vpop.f32.mrf.mxu0
    %501 = vmatprep.mubr.f32.mxu0 0.0
    %502 = vmatmul.mubr.f32.gmra.mxu0 %v366
    %v503 = vpop.f32.mrf.mxu0
    %v504 = vadd.f32 0.0, %v503
    %v505 = vpop.f32.mrf.mxu0
    %506 = vmatprep.mubr.f32.mxu0 0.0
    %507 = vmatmul.mubr.f32.gmra.mxu0 %v368
    %v508 = vpop.f32.mrf.mxu0
    %v509 = vadd.f32 0.0, %v508
    %v510 = vpop.f32.mrf.mxu0
    %511 = vmatprep.mubr.f32.mxu0 0.0
    %512 = vmatmul.mubr.f32.gmra.mxu0 %v370
    %v513 = vpop.f32.mrf.mxu0
    %v514 = vadd.f32 0.0, %v513
    %v515 = vpop.f32.mrf.mxu0
    %516 = vdwg.mxu0
    %v517 = vsel %vm225, %v242, 0
    %v519 = vsel %vm225, %v243, 0
    %v521 = vsel %vm225, %v245, 0
    %v523 = vsel %vm225, %v246, 0
    %v525 = vsel %vm225, %v248, 0
    %v527 = vsel %vm225, %v249, 0
    %v529 = vsel %vm225, %v251, 0
    %v531 = vsel %vm225, %v252, 0
    %v533 = vsel %vm225, %v254, 0
    %v535 = vsel %vm225, %v255, 0
    %v537 = vsel %vm225, %v257, 0
    %v539 = vsel %vm225, %v258, 0
    %v541 = vsel %vm225, %v260, 0
    %v543 = vsel %vm225, %v261, 0
    %v545 = vsel %vm225, %v263, 0
    %v547 = vsel %vm225, %v264, 0
    %549 = vmatprep.subr.mxu0 0.0
    %550 = vmatpush1.msra.mxu0 0.0
    %551 = vmatprep.subr.mxu0 0.0
    %552 = vmatpush1.msra.mxu0 0.0
    %553 = vmatprep.subr.mxu0 0.0
    %554 = vmatpush1.msra.mxu0 0.0
    %555 = vmatprep.subr.mxu0 0.0
    %556 = vmatpush1.msra.mxu0 0.0
    %557 = vmatprep.subr.mxu0 0.0
    %558 = vmatpush1.msra.mxu0 0.0
    %559 = vmatprep.subr.mxu0 0.0
    %560 = vmatpush1.msra.mxu0 0.0
    %561 = vmatprep.subr.mxu0 0.0
    %562 = vmatpush1.msra.mxu0 0.0
    %563 = vmatprep.subr.mxu0 0.0
    %564 = vmatpush1.msra.mxu0 0.0
    %565 = vmatprep.subr.mxu0 0.0
    %566 = vmatpush1.msra.mxu0 0.0
    %567 = vmatprep.subr.mxu0 0.0
    %568 = vmatpush1.msra.mxu0 0.0
    %569 = vmatprep.subr.mxu0 0.0
    %570 = vmatpush1.msra.mxu0 0.0
    %571 = vmatprep.subr.mxu0 0.0
    %572 = vmatpush1.msra.mxu0 0.0
    %573 = vmatprep.subr.mxu0 0.0
    %574 = vmatpush1.msra.mxu0 %v269
    %575 = vmatprep.subr.mxu0 0.0
    %576 = vmatpush1.msra.mxu0 %v268
    %577 = vmatprep.subr.mxu0 0.0
    %578 = vmatpush1.msra.mxu0 %v267
    %579 = vmatprep.subr.mxu0 0.0
    %580 = vmatpush1.msra.mxu0 %v266
    %581 = vmatprep.subr.mxu0 0.0
    %582 = vmatpush2.msra.mxu0 0.0
    %583 = vmatprep.subr.mxu0 0.0
    %584 = vmatpush2.msra.mxu0 0.0
    %585 = vmatprep.subr.mxu0 0.0
    %586 = vmatpush2.msra.mxu0 0.0
    %587 = vmatprep.subr.mxu0 0.0
    %588 = vmatpush2.msra.mxu0 0.0
    %589 = vmatprep.subr.mxu0 0.0
    %590 = vmatpush2.msra.mxu0 0.0
    %591 = vmatprep.subr.mxu0 0.0
    %592 = vmatpush2.msra.mxu0 0.0
    %593 = vmatprep.subr.mxu0 0.0
    %594 = vmatpush2.msra.mxu0 0.0
    %595 = vmatprep.subr.mxu0 0.0
    %596 = vmatpush2.msra.mxu0 0.0
    %597 = vmatprep.subr.mxu0 0.0
    %598 = vmatpush2.msra.mxu0 0.0
    %599 = vmatprep.subr.mxu0 0.0
    %600 = vmatpush2.msra.mxu0 0.0
    %601 = vmatprep.subr.mxu0 0.0
    %602 = vmatpush2.msra.mxu0 0.0
    %603 = vmatprep.subr.mxu0 0.0
    %604 = vmatpush2.msra.mxu0 0.0
    %605 = vmatprep.subr.mxu0 0.0
    %606 = vmatpush2.msra.mxu0 0.0
    %607 = vmatprep.subr.mxu0 0.0
    %608 = vmatpush2.msra.mxu0 0.0
    %609 = vmatprep.subr.mxu0 0.0
    %610 = vmatpush2.msra.mxu0 0.0
    %611 = vmatprep.subr.mxu0 0.0
    %612 = vmatpush2.msra.mxu0 0.0
    %613 = vmatprep.mubr.f32.mxu0 0.0
    %614 = vmatmul.mubr.f32.gmra.mxu0 %v517
    %v615 = vpop.f32.mrf.mxu0
    %v616 = vadd.f32 %v439, %v615
    %v617 = vpop.f32.mrf.mxu0
    %618 = vmatprep.mubr.f32.mxu0 0.0
    %619 = vmatmul.mubr.f32.gmra.mxu0 %v519
    %v620 = vpop.f32.mrf.mxu0
    %v621 = vadd.f32 %v444, %v620
    %v622 = vpop.f32.mrf.mxu0
    %623 = vmatprep.mubr.f32.mxu0 0.0
    %624 = vmatmul.mubr.f32.gmra.mxu0 %v521
    %v625 = vpop.f32.mrf.mxu0
    %v626 = vadd.f32 %v449, %v625
    %v627 = vpop.f32.mrf.mxu0
    %628 = vmatprep.mubr.f32.mxu0 0.0
    %629 = vmatmul.mubr.f32.gmra.mxu0 %v523
    %v630 = vpop.f32.mrf.mxu0
    %v631 = vadd.f32 %v454, %v630
    %v632 = vpop.f32.mrf.mxu0
    %633 = vmatprep.mubr.f32.mxu0 0.0
    %634 = vmatmul.mubr.f32.gmra.mxu0 %v525
    %v635 = vpop.f32.mrf.mxu0
    %v636 = vadd.f32 %v459, %v635
    %v637 = vpop.f32.mrf.mxu0
    %638 = vmatprep.mubr.f32.mxu0 0.0
    %639 = vmatmul.mubr.f32.gmra.mxu0 %v527
    %v640 = vpop.f32.mrf.mxu0
    %v641 = vadd.f32 %v464, %v640
    %v642 = vpop.f32.mrf.mxu0
    %643 = vmatprep.mubr.f32.mxu0 0.0
    %644 = vmatmul.mubr.f32.gmra.mxu0 %v529
    %v645 = vpop.f32.mrf.mxu0
    %v646 = vadd.f32 %v469, %v645
    %v647 = vpop.f32.mrf.mxu0
    %648 = vmatprep.mubr.f32.mxu0 0.0
    %649 = vmatmul.mubr.f32.gmra.mxu0 %v531
    %v650 = vpop.f32.mrf.mxu0
    %v651 = vadd.f32 %v474, %v650
    %v652 = vpop.f32.mrf.mxu0
    %653 = vmatprep.mubr.f32.mxu0 0.0
    %654 = vmatmul.mubr.f32.gmra.mxu0 %v533
    %v655 = vpop.f32.mrf.mxu0
    %v656 = vadd.f32 %v479, %v655
    %v657 = vpop.f32.mrf.mxu0
    %658 = vmatprep.mubr.f32.mxu0 0.0
    %659 = vmatmul.mubr.f32.gmra.mxu0 %v535
    %v660 = vpop.f32.mrf.mxu0
    %v661 = vadd.f32 %v484, %v660
    %v662 = vpop.f32.mrf.mxu0
    %663 = vmatprep.mubr.f32.mxu0 0.0
    %664 = vmatmul.mubr.f32.gmra.mxu0 %v537
    %v665 = vpop.f32.mrf.mxu0
    %v666 = vadd.f32 %v489, %v665
    %v667 = vpop.f32.mrf.mxu0
    %668 = vmatprep.mubr.f32.mxu0 0.0
    %669 = vmatmul.mubr.f32.gmra.mxu0 %v539
    %v670 = vpop.f32.mrf.mxu0
    %v671 = vadd.f32 %v494, %v670
    %v672 = vpop.f32.mrf.mxu0
    %673 = vmatprep.mubr.f32.mxu0 0.0
    %674 = vmatmul.mubr.f32.gmra.mxu0 %v541
    %v675 = vpop.f32.mrf.mxu0
    %v676 = vadd.f32 %v499, %v675
    %v677 = vpop.f32.mrf.mxu0
    %678 = vmatprep.mubr.f32.mxu0 0.0
    %679 = vmatmul.mubr.f32.gmra.mxu0 %v543
    %v680 = vpop.f32.mrf.mxu0
    %v681 = vadd.f32 %v504, %v680
    %v682 = vpop.f32.mrf.mxu0
    %683 = vmatprep.mubr.f32.mxu0 0.0
    %684 = vmatmul.mubr.f32.gmra.mxu0 %v545
    %v685 = vpop.f32.mrf.mxu0
    %v686 = vadd.f32 %v509, %v685
    %v687 = vpop.f32.mrf.mxu0
    %688 = vmatprep.mubr.f32.mxu0 0.0
    %689 = vmatmul.mubr.f32.gmra.mxu0 %v547
    %v690 = vpop.f32.mrf.mxu0
    %v691 = vadd.f32 %v514, %v690
    %v692 = vpop.f32.mrf.mxu0
    %693 = vdwg.mxu0
    %vm694 = vcmask 1045504
    %v695 = vrot.slane %v242, 2
    %v696 = vrot.slane %v243, 2
    %v697 = vsel %vm694, %v695, %v696
    %v698 = vrot.slane %v244, 2
    %v699 = vsel %vm694, %v696, %v698
    %v700 = vrot.slane %v245, 2
    %v701 = vrot.slane %v246, 2
    %v702 = vsel %vm694, %v700, %v701
    %v703 = vrot.slane %v247, 2
    %v704 = vsel %vm694, %v701, %v703
    %v705 = vrot.slane %v248, 2
    %v706 = vrot.slane %v249, 2
    %v707 = vsel %vm694, %v705, %v706
    %v708 = vrot.slane %v250, 2
    %v709 = vsel %vm694, %v706, %v708
    %v710 = vrot.slane %v251, 2
    %v711 = vrot.slane %v252, 2
    %v712 = vsel %vm694, %v710, %v711
    %v713 = vrot.slane %v253, 2
    %v714 = vsel %vm694, %v711, %v713
    %v715 = vrot.slane %v254, 2
    %v716 = vrot.slane %v255, 2
    %v717 = vsel %vm694, %v715, %v716
    %v718 = vrot.slane %v256, 2
    %v719 = vsel %vm694, %v716, %v718
    %v720 = vrot.slane %v257, 2
    %v721 = vrot.slane %v258, 2
    %v722 = vsel %vm694, %v720, %v721
    %v723 = vrot.slane %v259, 2
    %v724 = vsel %vm694, %v721, %v723
    %v725 = vrot.slane %v260, 2
    %v726 = vrot.slane %v261, 2
    %v727 = vsel %vm694, %v725, %v726
    %v728 = vrot.slane %v262, 2
    %v729 = vsel %vm694, %v726, %v728
    %v730 = vrot.slane %v263, 2
    %v731 = vrot.slane %v264, 2
    %v732 = vsel %vm694, %v730, %v731
    %v733 = vrot.slane %v265, 2
    %v734 = vsel %vm694, %v731, %v733
    %s735 = scalar_lea.vmem %s3, 64
    %v736 = vld [vmem:[%s735] sm:$0xff]
    %v737 = vld [vmem:[%s735 + $0x8] sm:$0xff]
    %v738 = vld [vmem:[%s735 + $0x10] sm:$0xff]
    %v739 = vld [vmem:[%s735 + $0x18] sm:$0xff]
    %v740 = vsel %vm225, %v697, 0
    %v742 = vsel %vm225, %v699, 0
    %v744 = vsel %vm225, %v702, 0
    %v746 = vsel %vm225, %v704, 0
    %v748 = vsel %vm225, %v707, 0
    %v750 = vsel %vm225, %v709, 0
    %v752 = vsel %vm225, %v712, 0
    %v754 = vsel %vm225, %v714, 0
    %v756 = vsel %vm225, %v717, 0
    %v758 = vsel %vm225, %v719, 0
    %v760 = vsel %vm225, %v722, 0
    %v762 = vsel %vm225, %v724, 0
    %v764 = vsel %vm225, %v727, 0
    %v766 = vsel %vm225, %v729, 0
    %v768 = vsel %vm225, %v732, 0
    %v770 = vsel %vm225, %v734, 0
    %772 = vmatprep.subr.mxu0 0.0
    %773 = vmatpush1.msra.mxu0 0.0
    %774 = vmatprep.subr.mxu0 0.0
    %775 = vmatpush1.msra.mxu0 0.0
    %776 = vmatprep.subr.mxu0 0.0
    %777 = vmatpush1.msra.mxu0 0.0
    %778 = vmatprep.subr.mxu0 0.0
    %779 = vmatpush1.msra.mxu0 0.0
    %780 = vmatprep.subr.mxu0 0.0
    %781 = vmatpush1.msra.mxu0 0.0
    %782 = vmatprep.subr.mxu0 0.0
    %783 = vmatpush1.msra.mxu0 0.0
    %784 = vmatprep.subr.mxu0 0.0
    %785 = vmatpush1.msra.mxu0 0.0
    %786 = vmatprep.subr.mxu0 0.0
    %787 = vmatpush1.msra.mxu0 0.0
    %788 = vmatprep.subr.mxu0 0.0
    %789 = vmatpush1.msra.mxu0 0.0
    %790 = vmatprep.subr.mxu0 0.0
    %791 = vmatpush1.msra.mxu0 0.0
    %792 = vmatprep.subr.mxu0 0.0
    %793 = vmatpush1.msra.mxu0 0.0
    %794 = vmatprep.subr.mxu0 0.0
    %795 = vmatpush1.msra.mxu0 0.0
    %796 = vmatprep.subr.mxu0 0.0
    %797 = vmatpush1.msra.mxu0 %v739
    %798 = vmatprep.subr.mxu0 0.0
    %799 = vmatpush1.msra.mxu0 %v738
    %800 = vmatprep.subr.mxu0 0.0
    %801 = vmatpush1.msra.mxu0 %v737
    %802 = vmatprep.subr.mxu0 0.0
    %803 = vmatpush1.msra.mxu0 %v736
    %804 = vmatprep.subr.mxu0 0.0
    %805 = vmatpush2.msra.mxu0 0.0
    %806 = vmatprep.subr.mxu0 0.0
    %807 = vmatpush2.msra.mxu0 0.0
    %808 = vmatprep.subr.mxu0 0.0
    %809 = vmatpush2.msra.mxu0 0.0
    %810 = vmatprep.subr.mxu0 0.0
    %811 = vmatpush2.msra.mxu0 0.0
    %812 = vmatprep.subr.mxu0 0.0
    %813 = vmatpush2.msra.mxu0 0.0
    %814 = vmatprep.subr.mxu0 0.0
    %815 = vmatpush2.msra.mxu0 0.0
    %816 = vmatprep.subr.mxu0 0.0
    %817 = vmatpush2.msra.mxu0 0.0
    %818 = vmatprep.subr.mxu0 0.0
    %819 = vmatpush2.msra.mxu0 0.0
    %820 = vmatprep.subr.mxu0 0.0
    %821 = vmatpush2.msra.mxu0 0.0
    %822 = vmatprep.subr.mxu0 0.0
    %823 = vmatpush2.msra.mxu0 0.0
    %824 = vmatprep.subr.mxu0 0.0
    %825 = vmatpush2.msra.mxu0 0.0
    %826 = vmatprep.subr.mxu0 0.0
    %827 = vmatpush2.msra.mxu0 0.0
    %828 = vmatprep.subr.mxu0 0.0
    %829 = vmatpush2.msra.mxu0 0.0
    %830 = vmatprep.subr.mxu0 0.0
    %831 = vmatpush2.msra.mxu0 0.0
    %832 = vmatprep.subr.mxu0 0.0
    %833 = vmatpush2.msra.mxu0 0.0
    %834 = vmatprep.subr.mxu0 0.0
    %835 = vmatpush2.msra.mxu0 0.0
    %836 = vmatprep.mubr.f32.mxu0 0.0
    %837 = vmatmul.mubr.f32.gmra.mxu0 %v740
    %v838 = vpop.f32.mrf.mxu0
    %v839 = vadd.f32 0.0, %v838
    %v840 = vpop.f32.mrf.mxu0
    %841 = vmatprep.mubr.f32.mxu0 0.0
    %842 = vmatmul.mubr.f32.gmra.mxu0 %v742
    %v843 = vpop.f32.mrf.mxu0
    %v844 = vadd.f32 0.0, %v843
    %v845 = vpop.f32.mrf.mxu0
    %846 = vmatprep.mubr.f32.mxu0 0.0
    %847 = vmatmul.mubr.f32.gmra.mxu0 %v744
    %v848 = vpop.f32.mrf.mxu0
    %v849 = vadd.f32 0.0, %v848
    %v850 = vpop.f32.mrf.mxu0
    %851 = vmatprep.mubr.f32.mxu0 0.0
    %852 = vmatmul.mubr.f32.gmra.mxu0 %v746
    %v853 = vpop.f32.mrf.mxu0
    %v854 = vadd.f32 0.0, %v853
    %v855 = vpop.f32.mrf.mxu0
    %856 = vmatprep.mubr.f32.mxu0 0.0
    %857 = vmatmul.mubr.f32.gmra.mxu0 %v748
    %v858 = vpop.f32.mrf.mxu0
    %v859 = vadd.f32 0.0, %v858
    %v860 = vpop.f32.mrf.mxu0
    %861 = vmatprep.mubr.f32.mxu0 0.0
    %862 = vmatmul.mubr.f32.gmra.mxu0 %v750
    %v863 = vpop.f32.mrf.mxu0
    %v864 = vadd.f32 0.0, %v863
    %v865 = vpop.f32.mrf.mxu0
    %866 = vmatprep.mubr.f32.mxu0 0.0
    %867 = vmatmul.mubr.f32.gmra.mxu0 %v752
    %v868 = vpop.f32.mrf.mxu0
    %v869 = vadd.f32 0.0, %v868
    %v870 = vpop.f32.mrf.mxu0
    %871 = vmatprep.mubr.f32.mxu0 0.0
    %872 = vmatmul.mubr.f32.gmra.mxu0 %v754
    %v873 = vpop.f32.mrf.mxu0
    %v874 = vadd.f32 0.0, %v873
    %v875 = vpop.f32.mrf.mxu0
    %876 = vmatprep.mubr.f32.mxu0 0.0
    %877 = vmatmul.mubr.f32.gmra.mxu0 %v756
    %v878 = vpop.f32.mrf.mxu0
    %v879 = vadd.f32 0.0, %v878
    %v880 = vpop.f32.mrf.mxu0
    %881 = vmatprep.mubr.f32.mxu0 0.0
    %882 = vmatmul.mubr.f32.gmra.mxu0 %v758
    %v883 = vpop.f32.mrf.mxu0
    %v884 = vadd.f32 0.0, %v883
    %v885 = vpop.f32.mrf.mxu0
    %886 = vmatprep.mubr.f32.mxu0 0.0
    %887 = vmatmul.mubr.f32.gmra.mxu0 %v760
    %v888 = vpop.f32.mrf.mxu0
    %v889 = vadd.f32 0.0, %v888
    %v890 = vpop.f32.mrf.mxu0
    %891 = vmatprep.mubr.f32.mxu0 0.0
    %892 = vmatmul.mubr.f32.gmra.mxu0 %v762
    %v893 = vpop.f32.mrf.mxu0
    %v894 = vadd.f32 0.0, %v893
    %v895 = vpop.f32.mrf.mxu0
    %896 = vmatprep.mubr.f32.mxu0 0.0
    %897 = vmatmul.mubr.f32.gmra.mxu0 %v764
    %v898 = vpop.f32.mrf.mxu0
    %v899 = vadd.f32 0.0, %v898
    %v900 = vpop.f32.mrf.mxu0
    %901 = vmatprep.mubr.f32.mxu0 0.0
    %902 = vmatmul.mubr.f32.gmra.mxu0 %v766
    %v903 = vpop.f32.mrf.mxu0
    %v904 = vadd.f32 0.0, %v903
    %v905 = vpop.f32.mrf.mxu0
    %906 = vmatprep.mubr.f32.mxu0 0.0
    %907 = vmatmul.mubr.f32.gmra.mxu0 %v768
    %v908 = vpop.f32.mrf.mxu0
    %v909 = vadd.f32 0.0, %v908
    %v910 = vpop.f32.mrf.mxu0
    %911 = vmatprep.mubr.f32.mxu0 0.0
    %912 = vmatmul.mubr.f32.gmra.mxu0 %v770
    %v913 = vpop.f32.mrf.mxu0
    %v914 = vadd.f32 0.0, %v913
    %v915 = vpop.f32.mrf.mxu0
    %916 = vdwg.mxu0
    %v917 = vadd.f32 %v616, %v839
    %v918 = vadd.f32 %v621, %v844
    %v919 = vadd.f32 %v626, %v849
    %v920 = vadd.f32 %v631, %v854
    %v921 = vadd.f32 %v636, %v859
    %v922 = vadd.f32 %v641, %v864
    %v923 = vadd.f32 %v646, %v869
    %v924 = vadd.f32 %v651, %v874
    %v925 = vadd.f32 %v656, %v879
    %v926 = vadd.f32 %v661, %v884
    %v927 = vadd.f32 %v666, %v889
    %v928 = vadd.f32 %v671, %v894
    %v929 = vadd.f32 %v676, %v899
    %v930 = vadd.f32 %v681, %v904
    %v931 = vadd.f32 %v686, %v909
    %v932 = vadd.f32 %v691, %v914
    %v933 = vld [vmem:[%s4] sm:$0x1]
    %v935 = vlaneseq
    %v936 = vshrl.u32 %v935, 7
    %v937 = vsub.s32 0, %v936
    %v938 = vrot.slane %v933, %v937
    %v940 = vadd.f32 %v917, %v938
    %v941 = vadd.f32 %v918, %v938
    %v942 = vadd.f32 %v919, %v938
    %v943 = vadd.f32 %v920, %v938
    %v944 = vadd.f32 %v921, %v938
    %v945 = vadd.f32 %v922, %v938
    %v946 = vadd.f32 %v923, %v938
    %v947 = vadd.f32 %v924, %v938
    %v948 = vadd.f32 %v925, %v938
    %v949 = vadd.f32 %v926, %v938
    %v950 = vadd.f32 %v927, %v938
    %v951 = vadd.f32 %v928, %v938
    %v952 = vadd.f32 %v929, %v938
    %v953 = vadd.f32 %v930, %v938
    %v954 = vadd.f32 %v931, %v938
    %v955 = vadd.f32 %v932, %v938
    %v956 = vmax.f32 %v940, 0.0
    %v957 = vmax.f32 %v941, 0.0
    %v958 = vmax.f32 %v942, 0.0
    %v959 = vmax.f32 %v943, 0.0
    %v960 = vmax.f32 %v944, 0.0
    %v961 = vmax.f32 %v945, 0.0
    %v962 = vmax.f32 %v946, 0.0
    %v963 = vmax.f32 %v947, 0.0
    %v964 = vmax.f32 %v948, 0.0
    %v965 = vmax.f32 %v949, 0.0
    %v966 = vmax.f32 %v950, 0.0
    %v967 = vmax.f32 %v951, 0.0
    %v968 = vmax.f32 %v952, 0.0
    %v969 = vmax.f32 %v953, 0.0
    %v970 = vmax.f32 %v954, 0.0
    %v971 = vmax.f32 %v955, 0.0
    %972 = vst.msk [vmem:[#allocation3] sm:$0x3] %vm216, 0.0
    %973 = vst.msk [vmem:[#allocation3 + $0x18] sm:$0x3] %vm216, 0.0
    %974 = vst.msk [vmem:[#allocation3 + $0x30] sm:$0x3] %vm216, 0.0
    %975 = vst.msk [vmem:[#allocation3 + $0x48] sm:$0x3] %vm216, 0.0
    %976 = vst.msk [vmem:[#allocation3 + $0x60] sm:$0x3] %vm216, 0.0
    %977 = vst.msk [vmem:[#allocation3 + $0x78] sm:$0x3] %vm216, 0.0
    %978 = vst.msk [vmem:[#allocation3 + $0x90] sm:$0x3] %vm216, 0.0
    %979 = vst.msk [vmem:[#allocation3 + $0xa8] sm:$0x3] %vm216, 0.0
    %980 = vst.msk [vmem:[#allocation3 + $0x2] sm:$0xff] %vm225, %v956
    %981 = vst.msk [vmem:[#allocation3 + $0xa] sm:$0x3] %vm216, %v957
    %982 = vst.msk [vmem:[#allocation3 + $0x1a] sm:$0xff] %vm225, %v958
    %983 = vst.msk [vmem:[#allocation3 + $0x22] sm:$0x3] %vm216, %v959
    %984 = vst.msk [vmem:[#allocation3 + $0x32] sm:$0xff] %vm225, %v960
    %985 = vst.msk [vmem:[#allocation3 + $0x3a] sm:$0x3] %vm216, %v961
    %986 = vst.msk [vmem:[#allocation3 + $0x4a] sm:$0xff] %vm225, %v962
    %987 = vst.msk [vmem:[#allocation3 + $0x52] sm:$0x3] %vm216, %v963
    %988 = vst.msk [vmem:[#allocation3 + $0x62] sm:$0xff] %vm225, %v964
    %989 = vst.msk [vmem:[#allocation3 + $0x6a] sm:$0x3] %vm216, %v965
    %990 = vst.msk [vmem:[#allocation3 + $0x7a] sm:$0xff] %vm225, %v966
    %991 = vst.msk [vmem:[#allocation3 + $0x82] sm:$0x3] %vm216, %v967
    %992 = vst.msk [vmem:[#allocation3 + $0x92] sm:$0xff] %vm225, %v968
    %993 = vst.msk [vmem:[#allocation3 + $0x9a] sm:$0x3] %vm216, %v969
    %994 = vst.msk [vmem:[#allocation3 + $0xaa] sm:$0xff] %vm225, %v970
    %995 = vst.msk [vmem:[#allocation3 + $0xb2] sm:$0x3] %vm216, %v971
    %996 = vst.msk [vmem:[#allocation3 + $0xc] sm:$0x3] %vm216, 0.0
    %997 = vst.msk [vmem:[#allocation3 + $0x24] sm:$0x3] %vm216, 0.0
    %998 = vst.msk [vmem:[#allocation3 + $0x3c] sm:$0x3] %vm216, 0.0
    %999 = vst.msk [vmem:[#allocation3 + $0x54] sm:$0x3] %vm216, 0.0
    %1000 = vst.msk [vmem:[#allocation3 + $0x6c] sm:$0x3] %vm216, 0.0
    %1001 = vst.msk [vmem:[#allocation3 + $0x84] sm:$0x3] %vm216, 0.0
    %1002 = vst.msk [vmem:[#allocation3 + $0x9c] sm:$0x3] %vm216, 0.0
    %1003 = vst.msk [vmem:[#allocation3 + $0xb4] sm:$0x3] %vm216, 0.0
    %v1004 = vld [vmem:[#allocation3] sm:$0xff]
    %v1005 = vld [vmem:[#allocation3 + $0x8] sm:$0xff]
    %v1006 = vld [vmem:[#allocation3 + $0x10] sm:$0x7]
    %v1007 = vld [vmem:[#allocation3 + $0x18] sm:$0xff]
    %v1008 = vld [vmem:[#allocation3 + $0x20] sm:$0xff]
    %v1009 = vld [vmem:[#allocation3 + $0x28] sm:$0x7]
    %v1010 = vld [vmem:[#allocation3 + $0x30] sm:$0xff]
    %v1011 = vld [vmem:[#allocation3 + $0x38] sm:$0xff]
    %v1012 = vld [vmem:[#allocation3 + $0x40] sm:$0x7]
    %v1013 = vld [vmem:[#allocation3 + $0x48] sm:$0xff]
    %v1014 = vld [vmem:[#allocation3 + $0x50] sm:$0xff]
    %v1015 = vld [vmem:[#allocation3 + $0x58] sm:$0x7]
    %v1016 = vld [vmem:[#allocation3 + $0x60] sm:$0xff]
    %v1017 = vld [vmem:[#allocation3 + $0x68] sm:$0xff]
    %v1018 = vld [vmem:[#allocation3 + $0x70] sm:$0x7]
    %v1019 = vld [vmem:[#allocation3 + $0x78] sm:$0xff]
    %v1020 = vld [vmem:[#allocation3 + $0x80] sm:$0xff]
    %v1021 = vld [vmem:[#allocation3 + $0x88] sm:$0x7]
    %v1022 = vld [vmem:[#allocation3 + $0x90] sm:$0xff]
    %v1023 = vld [vmem:[#allocation3 + $0x98] sm:$0xff]
    %v1024 = vld [vmem:[#allocation3 + $0xa0] sm:$0x7]
    %v1025 = vld [vmem:[#allocation3 + $0xa8] sm:$0xff]
    %v1026 = vld [vmem:[#allocation3 + $0xb0] sm:$0xff]
    %v1027 = vld [vmem:[#allocation3 + $0xb8] sm:$0x7]
    %v1052 = vrot.slane %v1004, 1
    %v1053 = vrot.slane %v1005, 1
    %v1054 = vsel %vm294, %v1052, %v1053
    %v1055 = vrot.slane %v1006, 1
    %v1056 = vsel %vm294, %v1053, %v1055
    %v1057 = vrot.slane %v1007, 1
    %v1058 = vrot.slane %v1008, 1
    %v1059 = vsel %vm294, %v1057, %v1058
    %v1060 = vrot.slane %v1009, 1
    %v1061 = vsel %vm294, %v1058, %v1060
    %v1062 = vrot.slane %v1010, 1
    %v1063 = vrot.slane %v1011, 1
    %v1064 = vsel %vm294, %v1062, %v1063
    %v1065 = vrot.slane %v1012, 1
    %v1066 = vsel %vm294, %v1063, %v1065
    %v1067 = vrot.slane %v1013, 1
    %v1068 = vrot.slane %v1014, 1
    %v1069 = vsel %vm294, %v1067, %v1068
    %v1070 = vrot.slane %v1015, 1
    %v1071 = vsel %vm294, %v1068, %v1070
    %v1072 = vrot.slane %v1016, 1
    %v1073 = vrot.slane %v1017, 1
    %v1074 = vsel %vm294, %v1072, %v1073
    %v1075 = vrot.slane %v1018, 1
    %v1076 = vsel %vm294, %v1073, %v1075
    %v1077 = vrot.slane %v1019, 1
    %v1078 = vrot.slane %v1020, 1
    %v1079 = vsel %vm294, %v1077, %v1078
    %v1080 = vrot.slane %v1021, 1
    %v1081 = vsel %vm294, %v1078, %v1080
    %v1082 = vrot.slane %v1022, 1
    %v1083 = vrot.slane %v1023, 1
    %v1084 = vsel %vm294, %v1082, %v1083
    %v1085 = vrot.slane %v1024, 1
    %v1086 = vsel %vm294, %v1083, %v1085
    %v1087 = vrot.slane %v1025, 1
    %v1088 = vrot.slane %v1026, 1
    %v1089 = vsel %vm294, %v1087, %v1088
    %v1090 = vrot.slane %v1027, 1
    %v1091 = vsel %vm294, %v1088, %v1090
    %v1092 = vld [vmem:[#allocation5] sm:$0xff]
    %v1093 = vld [vmem:[#allocation5 + $0x8] sm:$0xff]
    %v1094 = vld [vmem:[#allocation5 + $0x10] sm:$0xff]
    %v1095 = vld [vmem:[#allocation5 + $0x18] sm:$0xff]
    %v1096 = vrot.slane %v1004, 2
    %v1097 = vrot.slane %v1005, 2
    %v1098 = vsel %vm694, %v1096, %v1097
    %v1099 = vrot.slane %v1006, 2
    %v1100 = vsel %vm694, %v1097, %v1099
    %v1101 = vrot.slane %v1007, 2
    %v1102 = vrot.slane %v1008, 2
    %v1103 = vsel %vm694, %v1101, %v1102
    %v1104 = vrot.slane %v1009, 2
    %v1105 = vsel %vm694, %v1102, %v1104
    %v1106 = vrot.slane %v1010, 2
    %v1107 = vrot.slane %v1011, 2
    %v1108 = vsel %vm694, %v1106, %v1107
    %v1109 = vrot.slane %v1012, 2
    %v1110 = vsel %vm694, %v1107, %v1109
    %v1111 = vrot.slane %v1013, 2
    %v1112 = vrot.slane %v1014, 2
    %v1113 = vsel %vm694, %v1111, %v1112
    %v1114 = vrot.slane %v1015, 2
    %v1115 = vsel %vm694, %v1112, %v1114
    %v1116 = vrot.slane %v1016, 2
    %v1117 = vrot.slane %v1017, 2
    %v1118 = vsel %vm694, %v1116, %v1117
    %v1119 = vrot.slane %v1018, 2
    %v1120 = vsel %vm694, %v1117, %v1119
    %v1121 = vrot.slane %v1019, 2
    %v1122 = vrot.slane %v1020, 2
    %v1123 = vsel %vm694, %v1121, %v1122
    %v1124 = vrot.slane %v1021, 2
    %v1125 = vsel %vm694, %v1122, %v1124
    %v1126 = vrot.slane %v1022, 2
    %v1127 = vrot.slane %v1023, 2
    %v1128 = vsel %vm694, %v1126, %v1127
    %v1129 = vrot.slane %v1024, 2
    %v1130 = vsel %vm694, %v1127, %v1129
    %v1131 = vrot.slane %v1025, 2
    %v1132 = vrot.slane %v1026, 2
    %v1133 = vsel %vm694, %v1131, %v1132
    %v1134 = vrot.slane %v1027, 2
    %v1135 = vsel %vm694, %v1132, %v1134
    %s1136 = scalar_lea.vmem [#allocation5], 32
    %v1137 = vld [vmem:[%s1136] sm:$0xff]
    %v1138 = vld [vmem:[%s1136 + $0x8] sm:$0xff]
    %v1139 = vld [vmem:[%s1136 + $0x10] sm:$0xff]
    %v1140 = vld [vmem:[%s1136 + $0x18] sm:$0xff]
    %v1141 = vsel %vm225, %v1098, 0
    %v1143 = vsel %vm225, %v1100, 0
    %v1145 = vsel %vm225, %v1103, 0
    %v1147 = vsel %vm225, %v1105, 0
    %v1149 = vsel %vm225, %v1108, 0
    %v1151 = vsel %vm225, %v1110, 0
    %v1153 = vsel %vm225, %v1113, 0
    %v1155 = vsel %vm225, %v1115, 0
    %v1157 = vsel %vm225, %v1118, 0
    %v1159 = vsel %vm225, %v1120, 0
    %v1161 = vsel %vm225, %v1123, 0
    %v1163 = vsel %vm225, %v1125, 0
    %v1165 = vsel %vm225, %v1128, 0
    %v1167 = vsel %vm225, %v1130, 0
    %v1169 = vsel %vm225, %v1133, 0
    %v1171 = vsel %vm225, %v1135, 0
    %1173 = vmatprep.subr.mxu0 0.0
    %1174 = vmatpush1.msra.mxu0 0.0
    %1175 = vmatprep.subr.mxu0 0.0
    %1176 = vmatpush1.msra.mxu0 0.0
    %1177 = vmatprep.subr.mxu0 0.0
    %1178 = vmatpush1.msra.mxu0 0.0
    %1179 = vmatprep.subr.mxu0 0.0
    %1180 = vmatpush1.msra.mxu0 0.0
    %1181 = vmatprep.subr.mxu0 0.0
    %1182 = vmatpush1.msra.mxu0 0.0
    %1183 = vmatprep.subr.mxu0 0.0
    %1184 = vmatpush1.msra.mxu0 0.0
    %1185 = vmatprep.subr.mxu0 0.0
    %1186 = vmatpush1.msra.mxu0 0.0
    %1187 = vmatprep.subr.mxu0 0.0
    %1188 = vmatpush1.msra.mxu0 0.0
    %1189 = vmatprep.subr.mxu0 0.0
    %1190 = vmatpush1.msra.mxu0 0.0
    %1191 = vmatprep.subr.mxu0 0.0
    %1192 = vmatpush1.msra.mxu0 0.0
    %1193 = vmatprep.subr.mxu0 0.0
    %1194 = vmatpush1.msra.mxu0 0.0
    %1195 = vmatprep.subr.mxu0 0.0
    %1196 = vmatpush1.msra.mxu0 0.0
    %1197 = vmatprep.subr.mxu0 0.0
    %1198 = vmatpush1.msra.mxu0 %v1140
    %1199 = vmatprep.subr.mxu0 0.0
    %1200 = vmatpush1.msra.mxu0 %v1139
    %1201 = vmatprep.subr.mxu0 0.0
    %1202 = vmatpush1.msra.mxu0 %v1138
    %1203 = vmatprep.subr.mxu0 0.0
    %1204 = vmatpush1.msra.mxu0 %v1137
    %1205 = vmatprep.subr.mxu0 0.0
    %1206 = vmatpush2.msra.mxu0 0.0
    %1207 = vmatprep.subr.mxu0 0.0
    %1208 = vmatpush2.msra.mxu0 0.0
    %1209 = vmatprep.subr.mxu0 0.0
    %1210 = vmatpush2.msra.mxu0 0.0
    %1211 = vmatprep.subr.mxu0 0.0
    %1212 = vmatpush2.msra.mxu0 0.0
    %1213 = vmatprep.subr.mxu0 0.0
    %1214 = vmatpush2.msra.mxu0 0.0
    %1215 = vmatprep.subr.mxu0 0.0
    %1216 = vmatpush2.msra.mxu0 0.0
    %1217 = vmatprep.subr.mxu0 0.0
    %1218 = vmatpush2.msra.mxu0 0.0
    %1219 = vmatprep.subr.mxu0 0.0
    %1220 = vmatpush2.msra.mxu0 0.0
    %1221 = vmatprep.subr.mxu0 0.0
    %1222 = vmatpush2.msra.mxu0 0.0
    %1223 = vmatprep.subr.mxu0 0.0
    %1224 = vmatpush2.msra.mxu0 0.0
    %1225 = vmatprep.subr.mxu0 0.0
    %1226 = vmatpush2.msra.mxu0 0.0
    %1227 = vmatprep.subr.mxu0 0.0
    %1228 = vmatpush2.msra.mxu0 0.0
    %1229 = vmatprep.subr.mxu0 0.0
    %1230 = vmatpush2.msra.mxu0 0.0
    %1231 = vmatprep.subr.mxu0 0.0
    %1232 = vmatpush2.msra.mxu0 0.0
    %1233 = vmatprep.subr.mxu0 0.0
    %1234 = vmatpush2.msra.mxu0 0.0
    %1235 = vmatprep.subr.mxu0 0.0
    %1236 = vmatpush2.msra.mxu0 0.0
    %1237 = vmatprep.mubr.f32.mxu0 0.0
    %1238 = vmatmul.mubr.f32.gmra.mxu0 %v1141
    %v1239 = vpop.f32.mrf.mxu0
    %v1240 = vadd.f32 0.0, %v1239
    %v1241 = vpop.f32.mrf.mxu0
    %1242 = vmatprep.mubr.f32.mxu0 0.0
    %1243 = vmatmul.mubr.f32.gmra.mxu0 %v1143
    %v1244 = vpop.f32.mrf.mxu0
    %v1245 = vadd.f32 0.0, %v1244
    %v1246 = vpop.f32.mrf.mxu0
    %1247 = vmatprep.mubr.f32.mxu0 0.0
    %1248 = vmatmul.mubr.f32.gmra.mxu0 %v1145
    %v1249 = vpop.f32.mrf.mxu0
    %v1250 = vadd.f32 0.0, %v1249
    %v1251 = vpop.f32.mrf.mxu0
    %1252 = vmatprep.mubr.f32.mxu0 0.0
    %1253 = vmatmul.mubr.f32.gmra.mxu0 %v1147
    %v1254 = vpop.f32.mrf.mxu0
    %v1255 = vadd.f32 0.0, %v1254
    %v1256 = vpop.f32.mrf.mxu0
    %1257 = vmatprep.mubr.f32.mxu0 0.0
    %1258 = vmatmul.mubr.f32.gmra.mxu0 %v1149
    %v1259 = vpop.f32.mrf.mxu0
    %v1260 = vadd.f32 0.0, %v1259
    %v1261 = vpop.f32.mrf.mxu0
    %1262 = vmatprep.mubr.f32.mxu0 0.0
    %1263 = vmatmul.mubr.f32.gmra.mxu0 %v1151
    %v1264 = vpop.f32.mrf.mxu0
    %v1265 = vadd.f32 0.0, %v1264
    %v1266 = vpop.f32.mrf.mxu0
    %1267 = vmatprep.mubr.f32.mxu0 0.0
    %1268 = vmatmul.mubr.f32.gmra.mxu0 %v1153
    %v1269 = vpop.f32.mrf.mxu0
    %v1270 = vadd.f32 0.0, %v1269
    %v1271 = vpop.f32.mrf.mxu0
    %1272 = vmatprep.mubr.f32.mxu0 0.0
    %1273 = vmatmul.mubr.f32.gmra.mxu0 %v1155
    %v1274 = vpop.f32.mrf.mxu0
    %v1275 = vadd.f32 0.0, %v1274
    %v1276 = vpop.f32.mrf.mxu0
    %1277 = vmatprep.mubr.f32.mxu0 0.0
    %1278 = vmatmul.mubr.f32.gmra.mxu0 %v1157
    %v1279 = vpop.f32.mrf.mxu0
    %v1280 = vadd.f32 0.0, %v1279
    %v1281 = vpop.f32.mrf.mxu0
    %1282 = vmatprep.mubr.f32.mxu0 0.0
    %1283 = vmatmul.mubr.f32.gmra.mxu0 %v1159
    %v1284 = vpop.f32.mrf.mxu0
    %v1285 = vadd.f32 0.0, %v1284
    %v1286 = vpop.f32.mrf.mxu0
    %1287 = vmatprep.mubr.f32.mxu0 0.0
    %1288 = vmatmul.mubr.f32.gmra.mxu0 %v1161
    %v1289 = vpop.f32.mrf.mxu0
    %v1290 = vadd.f32 0.0, %v1289
    %v1291 = vpop.f32.mrf.mxu0
    %1292 = vmatprep.mubr.f32.mxu0 0.0
    %1293 = vmatmul.mubr.f32.gmra.mxu0 %v1163
    %v1294 = vpop.f32.mrf.mxu0
    %v1295 = vadd.f32 0.0, %v1294
    %v1296 = vpop.f32.mrf.mxu0
    %1297 = vmatprep.mubr.f32.mxu0 0.0
    %1298 = vmatmul.mubr.f32.gmra.mxu0 %v1165
    %v1299 = vpop.f32.mrf.mxu0
    %v1300 = vadd.f32 0.0, %v1299
    %v1301 = vpop.f32.mrf.mxu0
    %1302 = vmatprep.mubr.f32.mxu0 0.0
    %1303 = vmatmul.mubr.f32.gmra.mxu0 %v1167
    %v1304 = vpop.f32.mrf.mxu0
    %v1305 = vadd.f32 0.0, %v1304
    %v1306 = vpop.f32.mrf.mxu0
    %1307 = vmatprep.mubr.f32.mxu0 0.0
    %1308 = vmatmul.mubr.f32.gmra.mxu0 %v1169
    %v1309 = vpop.f32.mrf.mxu0
    %v1310 = vadd.f32 0.0, %v1309
    %v1311 = vpop.f32.mrf.mxu0
    %1312 = vmatprep.mubr.f32.mxu0 0.0
    %1313 = vmatmul.mubr.f32.gmra.mxu0 %v1171
    %v1314 = vpop.f32.mrf.mxu0
    %v1315 = vadd.f32 0.0, %v1314
    %v1316 = vpop.f32.mrf.mxu0
    %1317 = vdwg.mxu0
    %v1318 = vsel %vm225, %v1054, 0
    %v1320 = vsel %vm225, %v1056, 0
    %v1322 = vsel %vm225, %v1059, 0
    %v1324 = vsel %vm225, %v1061, 0
    %v1326 = vsel %vm225, %v1064, 0
    %v1328 = vsel %vm225, %v1066, 0
    %v1330 = vsel %vm225, %v1069, 0
    %v1332 = vsel %vm225, %v1071, 0
    %v1334 = vsel %vm225, %v1074, 0
    %v1336 = vsel %vm225, %v1076, 0
    %v1338 = vsel %vm225, %v1079, 0
    %v1340 = vsel %vm225, %v1081, 0
    %v1342 = vsel %vm225, %v1084, 0
    %v1344 = vsel %vm225, %v1086, 0
    %v1346 = vsel %vm225, %v1089, 0
    %v1348 = vsel %vm225, %v1091, 0
    %1350 = vmatprep.subr.mxu0 0.0
    %1351 = vmatpush1.msra.mxu0 0.0
    %1352 = vmatprep.subr.mxu0 0.0
    %1353 = vmatpush1.msra.mxu0 0.0
    %1354 = vmatprep.subr.mxu0 0.0
    %1355 = vmatpush1.msra.mxu0 0.0
    %1356 = vmatprep.subr.mxu0 0.0
    %1357 = vmatpush1.msra.mxu0 0.0
    %1358 = vmatprep.subr.mxu0 0.0
    %1359 = vmatpush1.msra.mxu0 0.0
    %1360 = vmatprep.subr.mxu0 0.0
    %1361 = vmatpush1.msra.mxu0 0.0
    %1362 = vmatprep.subr.mxu0 0.0
    %1363 = vmatpush1.msra.mxu0 0.0
    %1364 = vmatprep.subr.mxu0 0.0
    %1365 = vmatpush1.msra.mxu0 0.0
    %1366 = vmatprep.subr.mxu0 0.0
    %1367 = vmatpush1.msra.mxu0 0.0
    %1368 = vmatprep.subr.mxu0 0.0
    %1369 = vmatpush1.msra.mxu0 0.0
    %1370 = vmatprep.subr.mxu0 0.0
    %1371 = vmatpush1.msra.mxu0 0.0
    %1372 = vmatprep.subr.mxu0 0.0
    %1373 = vmatpush1.msra.mxu0 0.0
    %1374 = vmatprep.subr.mxu0 0.0
    %1375 = vmatpush1.msra.mxu0 %v1095
    %1376 = vmatprep.subr.mxu0 0.0
    %1377 = vmatpush1.msra.mxu0 %v1094
    %1378 = vmatprep.subr.mxu0 0.0
    %1379 = vmatpush1.msra.mxu0 %v1093
    %1380 = vmatprep.subr.mxu0 0.0
    %1381 = vmatpush1.msra.mxu0 %v1092
    %1382 = vmatprep.subr.mxu0 0.0
    %1383 = vmatpush2.msra.mxu0 0.0
    %1384 = vmatprep.subr.mxu0 0.0
    %1385 = vmatpush2.msra.mxu0 0.0
    %1386 = vmatprep.subr.mxu0 0.0
    %1387 = vmatpush2.msra.mxu0 0.0
    %1388 = vmatprep.subr.mxu0 0.0
    %1389 = vmatpush2.msra.mxu0 0.0
    %1390 = vmatprep.subr.mxu0 0.0
    %1391 = vmatpush2.msra.mxu0 0.0
    %1392 = vmatprep.subr.mxu0 0.0
    %1393 = vmatpush2.msra.mxu0 0.0
    %1394 = vmatprep.subr.mxu0 0.0
    %1395 = vmatpush2.msra.mxu0 0.0
    %1396 = vmatprep.subr.mxu0 0.0
    %1397 = vmatpush2.msra.mxu0 0.0
    %1398 = vmatprep.subr.mxu0 0.0
    %1399 = vmatpush2.msra.mxu0 0.0
    %1400 = vmatprep.subr.mxu0 0.0
    %1401 = vmatpush2.msra.mxu0 0.0
    %1402 = vmatprep.subr.mxu0 0.0
    %1403 = vmatpush2.msra.mxu0 0.0
    %1404 = vmatprep.subr.mxu0 0.0
    %1405 = vmatpush2.msra.mxu0 0.0
    %1406 = vmatprep.subr.mxu0 0.0
    %1407 = vmatpush2.msra.mxu0 0.0
    %1408 = vmatprep.subr.mxu0 0.0
    %1409 = vmatpush2.msra.mxu0 0.0
    %1410 = vmatprep.subr.mxu0 0.0
    %1411 = vmatpush2.msra.mxu0 0.0
    %1412 = vmatprep.subr.mxu0 0.0
    %1413 = vmatpush2.msra.mxu0 0.0
    %1414 = vmatprep.mubr.f32.mxu0 0.0
    %1415 = vmatmul.mubr.f32.gmra.mxu0 %v1318
    %v1416 = vpop.f32.mrf.mxu0
    %v1417 = vadd.f32 %v1240, %v1416
    %v1418 = vpop.f32.mrf.mxu0
    %1419 = vmatprep.mubr.f32.mxu0 0.0
    %1420 = vmatmul.mubr.f32.gmra.mxu0 %v1320
    %v1421 = vpop.f32.mrf.mxu0
    %v1422 = vadd.f32 %v1245, %v1421
    %v1423 = vpop.f32.mrf.mxu0
    %1424 = vmatprep.mubr.f32.mxu0 0.0
    %1425 = vmatmul.mubr.f32.gmra.mxu0 %v1322
    %v1426 = vpop.f32.mrf.mxu0
    %v1427 = vadd.f32 %v1250, %v1426
    %v1428 = vpop.f32.mrf.mxu0
    %1429 = vmatprep.mubr.f32.mxu0 0.0
    %1430 = vmatmul.mubr.f32.gmra.mxu0 %v1324
    %v1431 = vpop.f32.mrf.mxu0
    %v1432 = vadd.f32 %v1255, %v1431
    %v1433 = vpop.f32.mrf.mxu0
    %1434 = vmatprep.mubr.f32.mxu0 0.0
    %1435 = vmatmul.mubr.f32.gmra.mxu0 %v1326
    %v1436 = vpop.f32.mrf.mxu0
    %v1437 = vadd.f32 %v1260, %v1436
    %v1438 = vpop.f32.mrf.mxu0
    %1439 = vmatprep.mubr.f32.mxu0 0.0
    %1440 = vmatmul.mubr.f32.gmra.mxu0 %v1328
    %v1441 = vpop.f32.mrf.mxu0
    %v1442 = vadd.f32 %v1265, %v1441
    %v1443 = vpop.f32.mrf.mxu0
    %1444 = vmatprep.mubr.f32.mxu0 0.0
    %1445 = vmatmul.mubr.f32.gmra.mxu0 %v1330
    %v1446 = vpop.f32.mrf.mxu0
    %v1447 = vadd.f32 %v1270, %v1446
    %v1448 = vpop.f32.mrf.mxu0
    %1449 = vmatprep.mubr.f32.mxu0 0.0
    %1450 = vmatmul.mubr.f32.gmra.mxu0 %v1332
    %v1451 = vpop.f32.mrf.mxu0
    %v1452 = vadd.f32 %v1275, %v1451
    %v1453 = vpop.f32.mrf.mxu0
    %1454 = vmatprep.mubr.f32.mxu0 0.0
    %1455 = vmatmul.mubr.f32.gmra.mxu0 %v1334
    %v1456 = vpop.f32.mrf.mxu0
    %v1457 = vadd.f32 %v1280, %v1456
    %v1458 = vpop.f32.mrf.mxu0
    %1459 = vmatprep.mubr.f32.mxu0 0.0
    %1460 = vmatmul.mubr.f32.gmra.mxu0 %v1336
    %v1461 = vpop.f32.mrf.mxu0
    %v1462 = vadd.f32 %v1285, %v1461
    %v1463 = vpop.f32.mrf.mxu0
    %1464 = vmatprep.mubr.f32.mxu0 0.0
    %1465 = vmatmul.mubr.f32.gmra.mxu0 %v1338
    %v1466 = vpop.f32.mrf.mxu0
    %v1467 = vadd.f32 %v1290, %v1466
    %v1468 = vpop.f32.mrf.mxu0
    %1469 = vmatprep.mubr.f32.mxu0 0.0
    %1470 = vmatmul.mubr.f32.gmra.mxu0 %v1340
    %v1471 = vpop.f32.mrf.mxu0
    %v1472 = vadd.f32 %v1295, %v1471
    %v1473 = vpop.f32.mrf.mxu0
    %1474 = vmatprep.mubr.f32.mxu0 0.0
    %1475 = vmatmul.mubr.f32.gmra.mxu0 %v1342
    %v1476 = vpop.f32.mrf.mxu0
    %v1477 = vadd.f32 %v1300, %v1476
    %v1478 = vpop.f32.mrf.mxu0
    %1479 = vmatprep.mubr.f32.mxu0 0.0
    %1480 = vmatmul.mubr.f32.gmra.mxu0 %v1344
    %v1481 = vpop.f32.mrf.mxu0
    %v1482 = vadd.f32 %v1305, %v1481
    %v1483 = vpop.f32.mrf.mxu0
    %1484 = vmatprep.mubr.f32.mxu0 0.0
    %1485 = vmatmul.mubr.f32.gmra.mxu0 %v1346
    %v1486 = vpop.f32.mrf.mxu0
    %v1487 = vadd.f32 %v1310, %v1486
    %v1488 = vpop.f32.mrf.mxu0
    %1489 = vmatprep.mubr.f32.mxu0 0.0
    %1490 = vmatmul.mubr.f32.gmra.mxu0 %v1348
    %v1491 = vpop.f32.mrf.mxu0
    %v1492 = vadd.f32 %v1315, %v1491
    %v1493 = vpop.f32.mrf.mxu0
    %1494 = vdwg.mxu0
    %vm1495 = vcmask 1044480
    %v1496 = vrot.slane %v1004, 3
    %v1497 = vrot.slane %v1005, 3
    %v1498 = vsel %vm1495, %v1496, %v1497
    %v1499 = vrot.slane %v1006, 3
    %v1500 = vsel %vm1495, %v1497, %v1499
    %v1501 = vrot.slane %v1007, 3
    %v1502 = vrot.slane %v1008, 3
    %v1503 = vsel %vm1495, %v1501, %v1502
    %v1504 = vrot.slane %v1009, 3
    %v1505 = vsel %vm1495, %v1502, %v1504
    %v1506 = vrot.slane %v1010, 3
    %v1507 = vrot.slane %v1011, 3
    %v1508 = vsel %vm1495, %v1506, %v1507
    %v1509 = vrot.slane %v1012, 3
    %v1510 = vsel %vm1495, %v1507, %v1509
    %v1511 = vrot.slane %v1013, 3
    %v1512 = vrot.slane %v1014, 3
    %v1513 = vsel %vm1495, %v1511, %v1512
    %v1514 = vrot.slane %v1015, 3
    %v1515 = vsel %vm1495, %v1512, %v1514
    %v1516 = vrot.slane %v1016, 3
    %v1517 = vrot.slane %v1017, 3
    %v1518 = vsel %vm1495, %v1516, %v1517
    %v1519 = vrot.slane %v1018, 3
    %v1520 = vsel %vm1495, %v1517, %v1519
    %v1521 = vrot.slane %v1019, 3
    %v1522 = vrot.slane %v1020, 3
    %v1523 = vsel %vm1495, %v1521, %v1522
    %v1524 = vrot.slane %v1021, 3
    %v1525 = vsel %vm1495, %v1522, %v1524
    %v1526 = vrot.slane %v1022, 3
    %v1527 = vrot.slane %v1023, 3
    %v1528 = vsel %vm1495, %v1526, %v1527
    %v1529 = vrot.slane %v1024, 3
    %v1530 = vsel %vm1495, %v1527, %v1529
    %v1531 = vrot.slane %v1025, 3
    %v1532 = vrot.slane %v1026, 3
    %v1533 = vsel %vm1495, %v1531, %v1532
    %v1534 = vrot.slane %v1027, 3
    %v1535 = vsel %vm1495, %v1532, %v1534
    %s1536 = scalar_lea.vmem [#allocation5], 64
    %v1537 = vld [vmem:[%s1536] sm:$0xff]
    %v1538 = vld [vmem:[%s1536 + $0x8] sm:$0xff]
    %v1539 = vld [vmem:[%s1536 + $0x10] sm:$0xff]
    %v1540 = vld [vmem:[%s1536 + $0x18] sm:$0xff]
    %v1541 = vsel %vm225, %v1498, 0
    %v1543 = vsel %vm225, %v1500, 0
    %v1545 = vsel %vm225, %v1503, 0
    %v1547 = vsel %vm225, %v1505, 0
    %v1549 = vsel %vm225, %v1508, 0
    %v1551 = vsel %vm225, %v1510, 0
    %v1553 = vsel %vm225, %v1513, 0
    %v1555 = vsel %vm225, %v1515, 0
    %v1557 = vsel %vm225, %v1518, 0
    %v1559 = vsel %vm225, %v1520, 0
    %v1561 = vsel %vm225, %v1523, 0
    %v1563 = vsel %vm225, %v1525, 0
    %v1565 = vsel %vm225, %v1528, 0
    %v1567 = vsel %vm225, %v1530, 0
    %v1569 = vsel %vm225, %v1533, 0
    %v1571 = vsel %vm225, %v1535, 0
    %1573 = vmatprep.subr.mxu0 0.0
    %1574 = vmatpush1.msra.mxu0 0.0
    %1575 = vmatprep.subr.mxu0 0.0
    %1576 = vmatpush1.msra.mxu0 0.0
    %1577 = vmatprep.subr.mxu0 0.0
    %1578 = vmatpush1.msra.mxu0 0.0
    %1579 = vmatprep.subr.mxu0 0.0
    %1580 = vmatpush1.msra.mxu0 0.0
    %1581 = vmatprep.subr.mxu0 0.0
    %1582 = vmatpush1.msra.mxu0 0.0
    %1583 = vmatprep.subr.mxu0 0.0
    %1584 = vmatpush1.msra.mxu0 0.0
    %1585 = vmatprep.subr.mxu0 0.0
    %1586 = vmatpush1.msra.mxu0 0.0
    %1587 = vmatprep.subr.mxu0 0.0
    %1588 = vmatpush1.msra.mxu0 0.0
    %1589 = vmatprep.subr.mxu0 0.0
    %1590 = vmatpush1.msra.mxu0 0.0
    %1591 = vmatprep.subr.mxu0 0.0
    %1592 = vmatpush1.msra.mxu0 0.0
    %1593 = vmatprep.subr.mxu0 0.0
    %1594 = vmatpush1.msra.mxu0 0.0
    %1595 = vmatprep.subr.mxu0 0.0
    %1596 = vmatpush1.msra.mxu0 0.0
    %1597 = vmatprep.subr.mxu0 0.0
    %1598 = vmatpush1.msra.mxu0 %v1540
    %1599 = vmatprep.subr.mxu0 0.0
    %1600 = vmatpush1.msra.mxu0 %v1539
    %1601 = vmatprep.subr.mxu0 0.0
    %1602 = vmatpush1.msra.mxu0 %v1538
    %1603 = vmatprep.subr.mxu0 0.0
    %1604 = vmatpush1.msra.mxu0 %v1537
    %1605 = vmatprep.subr.mxu0 0.0
    %1606 = vmatpush2.msra.mxu0 0.0
    %1607 = vmatprep.subr.mxu0 0.0
    %1608 = vmatpush2.msra.mxu0 0.0
    %1609 = vmatprep.subr.mxu0 0.0
    %1610 = vmatpush2.msra.mxu0 0.0
    %1611 = vmatprep.subr.mxu0 0.0
    %1612 = vmatpush2.msra.mxu0 0.0
    %1613 = vmatprep.subr.mxu0 0.0
    %1614 = vmatpush2.msra.mxu0 0.0
    %1615 = vmatprep.subr.mxu0 0.0
    %1616 = vmatpush2.msra.mxu0 0.0
    %1617 = vmatprep.subr.mxu0 0.0
    %1618 = vmatpush2.msra.mxu0 0.0
    %1619 = vmatprep.subr.mxu0 0.0
    %1620 = vmatpush2.msra.mxu0 0.0
    %1621 = vmatprep.subr.mxu0 0.0
    %1622 = vmatpush2.msra.mxu0 0.0
    %1623 = vmatprep.subr.mxu0 0.0
    %1624 = vmatpush2.msra.mxu0 0.0
    %1625 = vmatprep.subr.mxu0 0.0
    %1626 = vmatpush2.msra.mxu0 0.0
    %1627 = vmatprep.subr.mxu0 0.0
    %1628 = vmatpush2.msra.mxu0 0.0
    %1629 = vmatprep.subr.mxu0 0.0
    %1630 = vmatpush2.msra.mxu0 0.0
    %1631 = vmatprep.subr.mxu0 0.0
    %1632 = vmatpush2.msra.mxu0 0.0
    %1633 = vmatprep.subr.mxu0 0.0
    %1634 = vmatpush2.msra.mxu0 0.0
    %1635 = vmatprep.subr.mxu0 0.0
    %1636 = vmatpush2.msra.mxu0 0.0
    %1637 = vmatprep.mubr.f32.mxu0 0.0
    %1638 = vmatmul.mubr.f32.gmra.mxu0 %v1541
    %v1639 = vpop.f32.mrf.mxu0
    %v1640 = vadd.f32 0.0, %v1639
    %v1641 = vpop.f32.mrf.mxu0
    %1642 = vmatprep.mubr.f32.mxu0 0.0
    %1643 = vmatmul.mubr.f32.gmra.mxu0 %v1543
    %v1644 = vpop.f32.mrf.mxu0
    %v1645 = vadd.f32 0.0, %v1644
    %v1646 = vpop.f32.mrf.mxu0
    %1647 = vmatprep.mubr.f32.mxu0 0.0
    %1648 = vmatmul.mubr.f32.gmra.mxu0 %v1545
    %v1649 = vpop.f32.mrf.mxu0
    %v1650 = vadd.f32 0.0, %v1649
    %v1651 = vpop.f32.mrf.mxu0
    %1652 = vmatprep.mubr.f32.mxu0 0.0
    %1653 = vmatmul.mubr.f32.gmra.mxu0 %v1547
    %v1654 = vpop.f32.mrf.mxu0
    %v1655 = vadd.f32 0.0, %v1654
    %v1656 = vpop.f32.mrf.mxu0
    %1657 = vmatprep.mubr.f32.mxu0 0.0
    %1658 = vmatmul.mubr.f32.gmra.mxu0 %v1549
    %v1659 = vpop.f32.mrf.mxu0
    %v1660 = vadd.f32 0.0, %v1659
    %v1661 = vpop.f32.mrf.mxu0
    %1662 = vmatprep.mubr.f32.mxu0 0.0
    %1663 = vmatmul.mubr.f32.gmra.mxu0 %v1551
    %v1664 = vpop.f32.mrf.mxu0
    %v1665 = vadd.f32 0.0, %v1664
    %v1666 = vpop.f32.mrf.mxu0
    %1667 = vmatprep.mubr.f32.mxu0 0.0
    %1668 = vmatmul.mubr.f32.gmra.mxu0 %v1553
    %v1669 = vpop.f32.mrf.mxu0
    %v1670 = vadd.f32 0.0, %v1669
    %v1671 = vpop.f32.mrf.mxu0
    %1672 = vmatprep.mubr.f32.mxu0 0.0
    %1673 = vmatmul.mubr.f32.gmra.mxu0 %v1555
    %v1674 = vpop.f32.mrf.mxu0
    %v1675 = vadd.f32 0.0, %v1674
    %v1676 = vpop.f32.mrf.mxu0
    %1677 = vmatprep.mubr.f32.mxu0 0.0
    %1678 = vmatmul.mubr.f32.gmra.mxu0 %v1557
    %v1679 = vpop.f32.mrf.mxu0
    %v1680 = vadd.f32 0.0, %v1679
    %v1681 = vpop.f32.mrf.mxu0
    %1682 = vmatprep.mubr.f32.mxu0 0.0
    %1683 = vmatmul.mubr.f32.gmra.mxu0 %v1559
    %v1684 = vpop.f32.mrf.mxu0
    %v1685 = vadd.f32 0.0, %v1684
    %v1686 = vpop.f32.mrf.mxu0
    %1687 = vmatprep.mubr.f32.mxu0 0.0
    %1688 = vmatmul.mubr.f32.gmra.mxu0 %v1561
    %v1689 = vpop.f32.mrf.mxu0
    %v1690 = vadd.f32 0.0, %v1689
    %v1691 = vpop.f32.mrf.mxu0
    %1692 = vmatprep.mubr.f32.mxu0 0.0
    %1693 = vmatmul.mubr.f32.gmra.mxu0 %v1563
    %v1694 = vpop.f32.mrf.mxu0
    %v1695 = vadd.f32 0.0, %v1694
    %v1696 = vpop.f32.mrf.mxu0
    %1697 = vmatprep.mubr.f32.mxu0 0.0
    %1698 = vmatmul.mubr.f32.gmra.mxu0 %v1565
    %v1699 = vpop.f32.mrf.mxu0
    %v1700 = vadd.f32 0.0, %v1699
    %v1701 = vpop.f32.mrf.mxu0
    %1702 = vmatprep.mubr.f32.mxu0 0.0
    %1703 = vmatmul.mubr.f32.gmra.mxu0 %v1567
    %v1704 = vpop.f32.mrf.mxu0
    %v1705 = vadd.f32 0.0, %v1704
    %v1706 = vpop.f32.mrf.mxu0
    %1707 = vmatprep.mubr.f32.mxu0 0.0
    %1708 = vmatmul.mubr.f32.gmra.mxu0 %v1569
    %v1709 = vpop.f32.mrf.mxu0
    %v1710 = vadd.f32 0.0, %v1709
    %v1711 = vpop.f32.mrf.mxu0
    %1712 = vmatprep.mubr.f32.mxu0 0.0
    %1713 = vmatmul.mubr.f32.gmra.mxu0 %v1571
    %v1714 = vpop.f32.mrf.mxu0
    %v1715 = vadd.f32 0.0, %v1714
    %v1716 = vpop.f32.mrf.mxu0
    %1717 = vdwg.mxu0
    %v1718 = vadd.f32 %v1417, %v1640
    %v1719 = vadd.f32 %v1422, %v1645
    %v1720 = vadd.f32 %v1427, %v1650
    %v1721 = vadd.f32 %v1432, %v1655
    %v1722 = vadd.f32 %v1437, %v1660
    %v1723 = vadd.f32 %v1442, %v1665
    %v1724 = vadd.f32 %v1447, %v1670
    %v1725 = vadd.f32 %v1452, %v1675
    %v1726 = vadd.f32 %v1457, %v1680
    %v1727 = vadd.f32 %v1462, %v1685
    %v1728 = vadd.f32 %v1467, %v1690
    %v1729 = vadd.f32 %v1472, %v1695
    %v1730 = vadd.f32 %v1477, %v1700
    %v1731 = vadd.f32 %v1482, %v1705
    %v1732 = vadd.f32 %v1487, %v1710
    %v1733 = vadd.f32 %v1492, %v1715
    %v1734 = vld [vmem:[%s6] sm:$0x1]
    %v1736 = vlaneseq
    %v1737 = vshrl.u32 %v1736, 7
    %v1738 = vsub.s32 0, %v1737
    %v1739 = vrot.slane %v1734, %v1738
    %v1741 = vadd.f32 %v1718, %v1739
    %v1742 = vadd.f32 %v1719, %v1739
    %v1743 = vadd.f32 %v1720, %v1739
    %v1744 = vadd.f32 %v1721, %v1739
    %v1745 = vadd.f32 %v1722, %v1739
    %v1746 = vadd.f32 %v1723, %v1739
    %v1747 = vadd.f32 %v1724, %v1739
    %v1748 = vadd.f32 %v1725, %v1739
    %v1749 = vadd.f32 %v1726, %v1739
    %v1750 = vadd.f32 %v1727, %v1739
    %v1751 = vadd.f32 %v1728, %v1739
    %v1752 = vadd.f32 %v1729, %v1739
    %v1753 = vadd.f32 %v1730, %v1739
    %v1754 = vadd.f32 %v1731, %v1739
    %v1755 = vadd.f32 %v1732, %v1739
    %v1756 = vadd.f32 %v1733, %v1739
    %v1757 = vmax.f32 %v1741, 0.0
    %v1758 = vmax.f32 %v1742, 0.0
    %v1759 = vmax.f32 %v1743, 0.0
    %v1760 = vmax.f32 %v1744, 0.0
    %v1761 = vmax.f32 %v1745, 0.0
    %v1762 = vmax.f32 %v1746, 0.0
    %v1763 = vmax.f32 %v1747, 0.0
    %v1764 = vmax.f32 %v1748, 0.0
    %v1765 = vmax.f32 %v1749, 0.0
    %v1766 = vmax.f32 %v1750, 0.0
    %v1767 = vmax.f32 %v1751, 0.0
    %v1768 = vmax.f32 %v1752, 0.0
    %v1769 = vmax.f32 %v1753, 0.0
    %v1770 = vmax.f32 %v1754, 0.0
    %v1771 = vmax.f32 %v1755, 0.0
    %v1772 = vmax.f32 %v1756, 0.0
    %v1773 = vsel %vm225, %v1757, 0.0
    %v1774 = vsel %vm216, %v1758, 0.0
    %v1775 = vadd.f32 %v1773, %v1774
    %v1776 = vrot.slane %v1775, 4
    %v1777 = vadd.f32 %v1775, %v1776
    %v1778 = vrot.slane %v1777, 2
    %v1779 = vadd.f32 %v1777, %v1778
    %v1780 = vrot.slane %v1779, 1
    %v1781 = vadd.f32 %v1779, %v1780
    %v1782 = vsel %vm225, %v1759, 0.0
    %v1783 = vsel %vm216, %v1760, 0.0
    %v1784 = vadd.f32 %v1782, %v1783
    %v1785 = vrot.slane %v1784, 4
    %v1786 = vadd.f32 %v1784, %v1785
    %v1787 = vrot.slane %v1786, 2
    %v1788 = vadd.f32 %v1786, %v1787
    %v1789 = vrot.slane %v1788, 1
    %v1790 = vadd.f32 %v1788, %v1789
    %v1791 = vsel %vm225, %v1761, 0.0
    %v1792 = vsel %vm216, %v1762, 0.0
    %v1793 = vadd.f32 %v1791, %v1792
    %v1794 = vrot.slane %v1793, 4
    %v1795 = vadd.f32 %v1793, %v1794
    %v1796 = vrot.slane %v1795, 2
    %v1797 = vadd.f32 %v1795, %v1796
    %v1798 = vrot.slane %v1797, 1
    %v1799 = vadd.f32 %v1797, %v1798
    %v1800 = vsel %vm225, %v1763, 0.0
    %v1801 = vsel %vm216, %v1764, 0.0
    %v1802 = vadd.f32 %v1800, %v1801
    %v1803 = vrot.slane %v1802, 4
    %v1804 = vadd.f32 %v1802, %v1803
    %v1805 = vrot.slane %v1804, 2
    %v1806 = vadd.f32 %v1804, %v1805
    %v1807 = vrot.slane %v1806, 1
    %v1808 = vadd.f32 %v1806, %v1807
    %v1809 = vsel %vm225, %v1765, 0.0
    %v1810 = vsel %vm216, %v1766, 0.0
    %v1811 = vadd.f32 %v1809, %v1810
    %v1812 = vrot.slane %v1811, 4
    %v1813 = vadd.f32 %v1811, %v1812
    %v1814 = vrot.slane %v1813, 2
    %v1815 = vadd.f32 %v1813, %v1814
    %v1816 = vrot.slane %v1815, 1
    %v1817 = vadd.f32 %v1815, %v1816
    %v1818 = vsel %vm225, %v1767, 0.0
    %v1819 = vsel %vm216, %v1768, 0.0
    %v1820 = vadd.f32 %v1818, %v1819
    %v1821 = vrot.slane %v1820, 4
    %v1822 = vadd.f32 %v1820, %v1821
    %v1823 = vrot.slane %v1822, 2
    %v1824 = vadd.f32 %v1822, %v1823
    %v1825 = vrot.slane %v1824, 1
    %v1826 = vadd.f32 %v1824, %v1825
    %v1827 = vsel %vm225, %v1769, 0.0
    %v1828 = vsel %vm216, %v1770, 0.0
    %v1829 = vadd.f32 %v1827, %v1828
    %v1830 = vrot.slane %v1829, 4
    %v1831 = vadd.f32 %v1829, %v1830
    %v1832 = vrot.slane %v1831, 2
    %v1833 = vadd.f32 %v1831, %v1832
    %v1834 = vrot.slane %v1833, 1
    %v1835 = vadd.f32 %v1833, %v1834
    %v1836 = vsel %vm225, %v1771, 0.0
    %v1837 = vsel %vm216, %v1772, 0.0
    %v1838 = vadd.f32 %v1836, %v1837
    %v1839 = vrot.slane %v1838, 4
    %v1840 = vadd.f32 %v1838, %v1839
    %v1841 = vrot.slane %v1840, 2
    %v1842 = vadd.f32 %v1840, %v1841
    %v1843 = vrot.slane %v1842, 1
    %v1844 = vadd.f32 %v1842, %v1843
    %v1845 = vld [vmem:[%s7] sm:$0x1]
    %v1847 = vlaneseq
    %v1848 = vshrl.u32 %v1847, 7
    %v1849 = vsub.s32 0, %v1848
    %v1850 = vrot.slane %v1845, %v1849
    %v1852 = vmul.f32 %v1781, %v1850
    %v1853 = vmul.f32 %v1790, %v1850
    %v1854 = vmul.f32 %v1799, %v1850
    %v1855 = vmul.f32 %v1808, %v1850
    %v1856 = vmul.f32 %v1817, %v1850
    %v1857 = vmul.f32 %v1826, %v1850
    %v1858 = vmul.f32 %v1835, %v1850
    %v1859 = vmul.f32 %v1844, %v1850
    %v1868 = vrot.slane %v1853, 7
    %vm1869 = vcmask 1041409
    %v1870 = vsel %vm1869, %v1868, %v1852
    %v1871 = vrot.slane %v1854, 6
    %vm1872 = vcmask 1042434
    %v1873 = vsel %vm1872, %v1871, %v1870
    %v1874 = vrot.slane %v1855, 5
    %vm1875 = vcmask 1043459
    %v1876 = vsel %vm1875, %v1874, %v1873
    %v1877 = vrot.slane %v1856, 4
    %vm1878 = vcmask 1044484
    %v1879 = vsel %vm1878, %v1877, %v1876
    %v1880 = vrot.slane %v1857, 3
    %vm1881 = vcmask 1045509
    %v1882 = vsel %vm1881, %v1880, %v1879
    %v1883 = vrot.slane %v1858, 2
    %vm1884 = vcmask 1046534
    %v1885 = vsel %vm1884, %v1883, %v1882
    %v1886 = vrot.slane %v1859, 1
    %vm1887 = vcmask 1047559
    %v1888 = vsel %vm1887, %v1886, %v1885
    %v1890 = vsel %vm225, %v1888, 0.0
    %1891 = vadd.xlane.f32.xlu0 %v1890
    %v1892 = vpop.xlane.xlu0 %1891
    %s1893 = sld [smem:[#allocation4]]
    %v1894 = vstv %s1893
    %v1895 = vadd.f32 %v1892, %v1894
    %v1897 = vlaneseq
    %v1898 = vand.u32 %v1897, 127
    %v1899 = vlaneseq
    %v1900 = vshrl.u32 %v1899, 7
    %v1901 = vsub.s32 %v1898, %v1900
    %v1902 = vrot.slane %v1895, %v1901
    %vm1904 = vcmask 57344
    %1905 = vst.msk [vmem:[#allocation8] sm:$0x1] %vm1904, %v1902
    // Predicated region
    $region42: #{tpu_custom_call.1} parent=1 // pred_check
      _
    $region43: #{tpu_custom_call.1} parent=1 // pred_check_branch
      %1907 = sbr.rel (0) target = $region45
    $region44: #{tpu_custom_call.1} parent=1 // pred_region
      %s1909 = ssub.s32 16, 16
      %1910 = vsyncadd [#allocation7], %s1909
      %s1912 = sshll.u32 [#allocation8], 4
      %s1913 = int_to_ptr.vmem [resolvable:$true] %s1912
      %1915 = dma.vmem_to_hbm [thread:$0]  %s1913, 16, %s9, [#allocation7]
    $region45: #{tpu_custom_call.1} parent=1 // pred_fallthru
      _
    // Predicated region
    $region46: #{tpu_custom_call.1} parent=1 // pred_check
      _
    $region47: #{tpu_custom_call.1} parent=1 // pred_check_branch
      %1917 = sbr.rel (0) target = $region49
    $region48: #{tpu_custom_call.1} parent=1 // pred_region
      %1918 = dma.done [#allocation7], 16
    $region49: #{tpu_custom_call.1} parent=1 // pred_fallthru
      _
    %1919 = vsyncpa [#allocation6], 1
    %1920 = vsyncpa [#allocation7], 1

</llo_original>
